<compile_context>
chip_gen: v6e
topology: v6e:2x2x1
jax: 0.10.0
libtpu: 0.0.40
codegen_flags: <defaults>
</compile_context>

<pallas_src>
import functools

import jax
import jax.numpy as jnp
from jax.experimental import pallas as pl
from jax.experimental.pallas import tpu as pltpu


def _attention_kernel(q_ref, k_ref, v_ref, hidden_ref, scores_ref, o_scr,
                      *, num_heads, d_head, scale):
    """One grid step == one (batch element, N-tile).

    q_ref: (1, H, TN, d) bf16     k_ref/v_ref: (1, H, M, d) bf16
    hidden_ref: (1, TN, C) bf16   scores_ref: (1, H, TN, M) bf16
    o_scr: (TN, C) f32 VMEM scratch used to merge heads into one lane-dense store.
    """
    q = q_ref[0]   # (H, TN, d)
    k = k_ref[0]   # (H, M, d)
    v = v_ref[0]   # (H, M, d)

    # Head-batched QK^T: contract d, batch H -> (H, TN, M), f32 accumulation.
    s = jnp.einsum('hnd,hmd->hnm', q, k,
                   preferred_element_type=jnp.float32) * scale

    # f32 softmax (max-subtracted); denominator via EUP approx reciprocal.
    s = s - jnp.max(s, axis=-1, keepdims=True)
    p = jnp.exp(s)
    p = p * pl.reciprocal(jnp.sum(p, axis=-1, keepdims=True), approx=True)

    # Post-softmax attention scores, bf16, lane-dense (last dim = M).
    scores_ref[0] = p.astype(scores_ref.dtype)

    # Head-batched P@V: (H, TN, M) x (H, M, d) -> (H, TN, d), f32 accumulation.
    o = jnp.einsum('hnm,hmd->hnd', p.astype(jnp.bfloat16), v,
                   preferred_element_type=jnp.float32)

    # Merge heads into a (TN, C) scratch, then one full-width lane-dense store.
    for h in range(num_heads):
        o_scr[:, h * d_head:(h + 1) * d_head] = o[h]
    hidden_ref[0] = o_scr[...].astype(hidden_ref.dtype)


def _round_up(x, m):
    return (x + m - 1) // m * m


def _tile_vmem_bytes(tn, m, h, c, d):
    """Conservative per-step VMEM estimate (double-buffered I/O blocks + scratch)."""
    lane = lambda x: _round_up(max(x, 1), 128)
    sub = lambda x: _round_up(max(x, 1), 8)
    bf16 = 2
    q_blk = 2 * h * sub(tn) * lane(d) * bf16          # q tile, double-buffered
    kv_blk = 2 * 2 * h * sub(m) * lane(d) * bf16      # k + v blocks
    hid_blk = 2 * sub(tn) * lane(c) * bf16            # hidden output block
    sc_blk = 2 * h * sub(tn) * lane(m) * bf16         # scores output block
    scratch = sub(tn) * lane(c) * 4                   # f32 head-merge scratch
    return q_blk + kv_blk + hid_blk + sc_blk + scratch


def multi_head_attention(input_q, input_k, input_v, params, num_heads):
    """JAX wrapper matching MultiHeadAttention.forward with all optional args None.

    Returns (hidden_states (B, N, C), attention_scores (B, H, N, M)), both bf16.
    """
    B, N, C = input_q.shape
    M = input_k.shape[1]
    assert C % num_heads == 0
    d_head = C // num_heads
    scale = 1.0 / (d_head ** 0.5)
    compute_dtype = jnp.bfloat16

    # Q/K/V projections as XLA GEMMs (bf16 operands, f32 accumulation),
    # delivered to the kernel already split per head (B, H, L, d). This keeps
    # the kernel's VMEM footprint to attention-only blocks and removes any
    # cross-tile dependency, so both grid axes can be "parallel".
    def project(x, w, b, length):
        y = jnp.dot(x.astype(compute_dtype), w.T.astype(compute_dtype),
                    preferred_element_type=jnp.float32) + b.astype(jnp.float32)
        y = y.reshape(B, length, num_heads, d_head).transpose(0, 2, 1, 3)
        return y.astype(compute_dtype)

    q = project(input_q, params["wq"], params["bq"], N)   # (B, H, N, d)
    k = project(input_k, params["wk"], params["bk"], M)   # (B, H, M, d)
    v = project(input_v, params["wv"], params["bv"], M)   # (B, H, M, d)

    # N-tile selection against a VMEM budget that also fits v7x (64 MiB phys).
    vmem_budget = 32 * 1024 * 1024
    if N <= 128:
        TN = _round_up(N, 8)
    else:
        n128 = _round_up(N, 128)
        TN = 128
        for cand in (512, 256, 128):
            if (cand <= n128 and n128 % cand == 0 and
                    _tile_vmem_bytes(cand, M, num_heads, C, d_head) <= vmem_budget):
                TN = cand
                break
    N_pad = _round_up(N, TN)
    if N_pad != N:
        q = jnp.pad(q, ((0, 0), (0, 0), (0, N_pad - N), (0, 0)))
    num_n = N_pad // TN

    vmem_bytes = _tile_vmem_bytes(TN, M, num_heads, C, d_head)
    vmem_limit = int(min(max(vmem_bytes + (8 << 20), 16 << 20), 96 << 20))

    kernel = functools.partial(_attention_kernel, num_heads=num_heads,
                               d_head=d_head, scale=scale)

    grid_spec = pltpu.PrefetchScalarGridSpec(
        num_scalar_prefetch=0,
        grid=(B, num_n),
        in_specs=[
            pl.BlockSpec((1, num_heads, TN, d_head), lambda b, n: (b, 0, n, 0)),
            pl.BlockSpec((1, num_heads, M, d_head), lambda b, n: (b, 0, 0, 0)),
            pl.BlockSpec((1, num_heads, M, d_head), lambda b, n: (b, 0, 0, 0)),
        ],
        out_specs=[
            pl.BlockSpec((1, TN, C), lambda b, n: (b, n, 0)),
            pl.BlockSpec((1, num_heads, TN, M), lambda b, n: (b, 0, n, 0)),
        ],
        scratch_shapes=[
            pltpu.VMEM((TN, C), jnp.float32),   # head-merge accumulator
        ],
    )

    hidden, scores = pl.pallas_call(
        kernel,
        grid_spec=grid_spec,
        out_shape=(
            jax.ShapeDtypeStruct((B, N_pad, C), compute_dtype),
            jax.ShapeDtypeStruct((B, num_heads, N_pad, M), compute_dtype),
        ),
        compiler_params=pltpu.CompilerParams(
            dimension_semantics=("parallel", "parallel"),
            vmem_limit_bytes=vmem_limit,
        ),
    )(q, k, v)

    if N_pad != N:
        hidden = hidden[:, :N]
        scores = scores[:, :, :N]
    return hidden, scores


def _reference_mha(input_q, input_k, input_v, params, num_heads):
    """Pure-JAX f32 reference mirroring the PyTorch module (all optional args None)."""
    B, N, C = input_q.shape
    M = input_k.shape[1]
    d_head = C // num_heads

    def proj(x, w, b):
        return x @ w.T + b

    q = proj(input_q, params["wq"], params["bq"]).reshape(B, N, num_heads, d_head)
    k = proj(input_k, params["wk"], params["bk"]).reshape(B, M, num_heads, d_head)
    v = proj(input_v, params["wv"], params["bv"]).reshape(B, M, num_heads, d_head)
    q = q.transpose(0, 2, 1, 3)  # (B, H, N, d)
    k = k.transpose(0, 2, 1, 3)  # (B, H, M, d)
    v = v.transpose(0, 2, 1, 3)  # (B, H, M, d)

    scores = jnp.einsum("bhnc,bhmc->bhnm", q, k) / (d_head ** 0.5)
    scores = jax.nn.softmax(scores, axis=-1)
    hidden = jnp.einsum("bhnm,bhmc->bhnc", scores, v)
    hidden = hidden.transpose(0, 2, 1, 3).reshape(B, N, C)
    return hidden, scores


if __name__ == "__main__":
    # Small but lane-aligned shapes: last dims are multiples of 128 so all
    # output stores are lane-dense (unmasked vst).
    B, N, M = 2, 128, 128
    d_model, num_heads = 128, 4

    key = jax.random.PRNGKey(0)
    k_xq, k_xk, k_xv, k_wq, k_wk, k_wv, k_bq, k_bk, k_bv = jax.random.split(key, 9)

    input_q = jax.random.normal(k_xq, (B, N, d_model), dtype=jnp.float32)
    input_k = jax.random.normal(k_xk, (B, M, d_model), dtype=jnp.float32)
    input_v = jax.random.normal(k_xv, (B, M, d_model), dtype=jnp.float32)

    # Deterministic synthetic nn.Linear parameters (weight shape (out, in)).
    scale = 1.0 / (d_model ** 0.5)
    params = {
        "wq": jax.random.uniform(k_wq, (d_model, d_model), jnp.float32, -scale, scale),
        "wk": jax.random.uniform(k_wk, (d_model, d_model), jnp.float32, -scale, scale),
        "wv": jax.random.uniform(k_wv, (d_model, d_model), jnp.float32, -scale, scale),
        "bq": jax.random.uniform(k_bq, (d_model,), jnp.float32, -scale, scale),
        "bk": jax.random.uniform(k_bk, (d_model,), jnp.float32, -scale, scale),
        "bv": jax.random.uniform(k_bv, (d_model,), jnp.float32, -scale, scale),
    }

    hidden, scores = multi_head_attention(input_q, input_k, input_v, params, num_heads)
    hidden = jax.block_until_ready(hidden)
    scores = jax.block_until_ready(scores)

    ref_hidden, ref_scores = _reference_mha(input_q, input_k, input_v, params, num_heads)
    assert hidden.shape == (B, N, d_model)
    assert scores.shape == (B, num_heads, N, M)
    # bf16 MXU operands / bf16 outputs with f32 accumulation & softmax ->
    # compare against the f32 reference with a bf16-appropriate tolerance.
    assert jnp.allclose(hidden.astype(jnp.float32), ref_hidden, atol=3e-2, rtol=3e-2)
    assert jnp.allclose(scores.astype(jnp.float32), ref_scores, atol=3e-2, rtol=3e-2)

    print("KERNEL_OK")
</pallas_src>

<mosaic_0001>
module attributes {stable_mosaic.version = 11 : i64} {
  func.func @_attention_kernel(%arg0: i32, %arg1: i32, %arg2: memref<1x4x128x32xbf16, #tpu.memory_space<vmem>>, %arg3: memref<1x4x128x32xbf16, #tpu.memory_space<vmem>>, %arg4: memref<1x4x128x32xbf16, #tpu.memory_space<vmem>>, %arg5: memref<1x128x128xbf16, #tpu.memory_space<vmem>>, %arg6: memref<1x4x128x128xbf16, #tpu.memory_space<vmem>>, %arg7: memref<128x128xf32, #tpu.memory_space<vmem>>) attributes {dimension_semantics = [#tpu.dimension_semantics<parallel>, #tpu.dimension_semantics<parallel>], iteration_bounds = array<i64: 2, 1>, scalar_prefetch = 0 : i64, scratch_operands = 1 : i64, tpu.core_type = #tpu.core_type<tc>, window_params = [{transform_indices = @transform_0, window_bounds = array<i64: 1, 4, 128, 32>}, {transform_indices = @transform_1, window_bounds = array<i64: 1, 4, 128, 32>}, {transform_indices = @transform_2, window_bounds = array<i64: 1, 4, 128, 32>}, {transform_indices = @transform_3, window_bounds = array<i64: 1, 128, 128>}, {transform_indices = @transform_4, window_bounds = array<i64: 1, 4, 128, 128>}]} {
    %c0 = arith.constant 0 : index
    %c0_0 = arith.constant 0 : index
    %c0_1 = arith.constant 0 : index
    %c0_2 = arith.constant 0 : index
    %0 = vector.load %arg2[%c0, %c0_0, %c0_1, %c0_2] : memref<1x4x128x32xbf16, #tpu.memory_space<vmem>>, vector<1x4x128x32xbf16>
    %1 = vector.shape_cast %0 : vector<1x4x128x32xbf16> to vector<4x128x32xbf16>
    %c0_3 = arith.constant 0 : index
    %c0_4 = arith.constant 0 : index
    %c0_5 = arith.constant 0 : index
    %c0_6 = arith.constant 0 : index
    %2 = vector.load %arg3[%c0_3, %c0_4, %c0_5, %c0_6] : memref<1x4x128x32xbf16, #tpu.memory_space<vmem>>, vector<1x4x128x32xbf16>
    %3 = vector.shape_cast %2 : vector<1x4x128x32xbf16> to vector<4x128x32xbf16>
    %c0_7 = arith.constant 0 : index
    %c0_8 = arith.constant 0 : index
    %c0_9 = arith.constant 0 : index
    %c0_10 = arith.constant 0 : index
    %4 = vector.load %arg4[%c0_7, %c0_8, %c0_9, %c0_10] : memref<1x4x128x32xbf16, #tpu.memory_space<vmem>>, vector<1x4x128x32xbf16>
    %5 = vector.shape_cast %4 : vector<1x4x128x32xbf16> to vector<4x128x32xbf16>
    "tpu.trace_start"() <{level = 10 : i32, message = "hnd,hmd->hnm"}> : () -> ()
    %cst = arith.constant dense<0.000000e+00> : vector<4x128x128xf32>
    %6 = tpu.matmul %1, %3, %cst {dimension_numbers = #tpu.dot_dimension_numbers<[2], [2], [1], [1], [0, 0, 0, 1, 1, 1], [0], [0]>} : vector<4x128x32xbf16>, vector<4x128x32xbf16>, vector<4x128x128xf32> -> vector<4x128x128xf32>
    "tpu.trace_stop"() : () -> ()
    %cst_11 = arith.constant 0.176776692 : f32
    %7 = vector.broadcast %cst_11 : f32 to vector<4x128x128xf32>
    %8 = arith.mulf %6, %7 : vector<4x128x128xf32>
    %cst_12 = arith.constant dense<0xFF800000> : vector<4x128xf32>
    %9 = vector.multi_reduction <maximumf>, %8, %cst_12 [2] : vector<4x128x128xf32> to vector<4x128xf32>
    %10 = vector.shape_cast %9 : vector<4x128xf32> to vector<4x128x1xf32>
    %11 = vector.broadcast %10 : vector<4x128x1xf32> to vector<4x128x128xf32>
    %12 = arith.subf %8, %11 : vector<4x128x128xf32>
    %13 = math.exp %12 : vector<4x128x128xf32>
    %cst_13 = arith.constant dense<0.000000e+00> : vector<4x128xf32>
    %14 = vector.multi_reduction <add>, %13, %cst_13 [2] : vector<4x128x128xf32> to vector<4x128xf32>
    %15 = vector.shape_cast %14 : vector<4x128xf32> to vector<4x128x1xf32>
    %16 = tpu.reciprocal %15 {approx = true} : vector<4x128x1xf32> -> vector<4x128x1xf32>
    %17 = vector.broadcast %16 : vector<4x128x1xf32> to vector<4x128x128xf32>
    %18 = arith.mulf %13, %17 : vector<4x128x128xf32>
    %19 = arith.truncf %18 : vector<4x128x128xf32> to vector<4x128x128xbf16>
    %c0_14 = arith.constant 0 : index
    %c0_15 = arith.constant 0 : index
    %c0_16 = arith.constant 0 : index
    %c0_17 = arith.constant 0 : index
    %20 = vector.load %arg6[%c0_14, %c0_15, %c0_16, %c0_17] : memref<1x4x128x128xbf16, #tpu.memory_space<vmem>>, vector<1x4x128x128xbf16>
    %21 = vector.shape_cast %20 : vector<1x4x128x128xbf16> to vector<4x128x128xbf16>
    %22 = vector.shape_cast %19 : vector<4x128x128xbf16> to vector<1x4x128x128xbf16>
    tpu.vector_store %arg6[%c0_14, %c0_15, %c0_16, %c0_17], %22 {strides = array<i32>} : memref<1x4x128x128xbf16, #tpu.memory_space<vmem>>, vector<1x4x128x128xbf16>,
    %23 = arith.truncf %18 : vector<4x128x128xf32> to vector<4x128x128xbf16>
    "tpu.trace_start"() <{level = 10 : i32, message = "hnm,hmd->hnd"}> : () -> ()
    %cst_18 = arith.constant dense<0.000000e+00> : vector<4x128x32xf32>
    %24 = tpu.matmul %23, %5, %cst_18 {dimension_numbers = #tpu.dot_dimension_numbers<[2], [1], [1], [2], [0, 0, 0, 1, 1, 2], [0], [0]>} : vector<4x128x128xbf16>, vector<4x128x32xbf16>, vector<4x128x32xf32> -> vector<4x128x32xf32>
    "tpu.trace_stop"() : () -> ()
    %25 = vector.extract_strided_slice %24 {offsets = [0, 0, 0], sizes = [1, 128, 32], strides = [1, 1, 1]} : vector<4x128x32xf32> to vector<1x128x32xf32>
    %26 = vector.shape_cast %25 : vector<1x128x32xf32> to vector<128x32xf32>
    %c0_19 = arith.constant 0 : index
    %c0_20 = arith.constant 0 : index
    %27 = vector.load %arg7[%c0_19, %c0_20] : memref<128x128xf32, #tpu.memory_space<vmem>>, vector<128x32xf32>
    tpu.vector_store %arg7[%c0_19, %c0_20], %26 {strides = array<i32>} : memref<128x128xf32, #tpu.memory_space<vmem>>, vector<128x32xf32>,
    %28 = vector.extract_strided_slice %24 {offsets = [1, 0, 0], sizes = [1, 128, 32], strides = [1, 1, 1]} : vector<4x128x32xf32> to vector<1x128x32xf32>
    %29 = vector.shape_cast %28 : vector<1x128x32xf32> to vector<128x32xf32>
    %c0_21 = arith.constant 0 : index
    %c32 = arith.constant 32 : index
    %30 = vector.load %arg7[%c0_21, %c32] : memref<128x128xf32, #tpu.memory_space<vmem>>, vector<128x32xf32>
    tpu.vector_store %arg7[%c0_21, %c32], %29 {strides = array<i32>} : memref<128x128xf32, #tpu.memory_space<vmem>>, vector<128x32xf32>,
    %31 = vector.extract_strided_slice %24 {offsets = [2, 0, 0], sizes = [1, 128, 32], strides = [1, 1, 1]} : vector<4x128x32xf32> to vector<1x128x32xf32>
    %32 = vector.shape_cast %31 : vector<1x128x32xf32> to vector<128x32xf32>
    %c0_22 = arith.constant 0 : index
    %c64 = arith.constant 64 : index
    %33 = vector.load %arg7[%c0_22, %c64] : memref<128x128xf32, #tpu.memory_space<vmem>>, vector<128x32xf32>
    tpu.vector_store %arg7[%c0_22, %c64], %32 {strides = array<i32>} : memref<128x128xf32, #tpu.memory_space<vmem>>, vector<128x32xf32>,
    %34 = vector.extract_strided_slice %24 {offsets = [3, 0, 0], sizes = [1, 128, 32], strides = [1, 1, 1]} : vector<4x128x32xf32> to vector<1x128x32xf32>
    %35 = vector.shape_cast %34 : vector<1x128x32xf32> to vector<128x32xf32>
    %c0_23 = arith.constant 0 : index
    %c96 = arith.constant 96 : index
    %36 = vector.load %arg7[%c0_23, %c96] : memref<128x128xf32, #tpu.memory_space<vmem>>, vector<128x32xf32>
    tpu.vector_store %arg7[%c0_23, %c96], %35 {strides = array<i32>} : memref<128x128xf32, #tpu.memory_space<vmem>>, vector<128x32xf32>,
    %c0_24 = arith.constant 0 : index
    %c0_25 = arith.constant 0 : index
    %37 = vector.load %arg7[%c0_24, %c0_25] : memref<128x128xf32, #tpu.memory_space<vmem>>, vector<128x128xf32>
    %38 = arith.truncf %37 : vector<128x128xf32> to vector<128x128xbf16>
    %c0_26 = arith.constant 0 : index
    %c0_27 = arith.constant 0 : index
    %c0_28 = arith.constant 0 : index
    %39 = vector.load %arg5[%c0_26, %c0_27, %c0_28] : memref<1x128x128xbf16, #tpu.memory_space<vmem>>, vector<1x128x128xbf16>
    %40 = vector.shape_cast %39 : vector<1x128x128xbf16> to vector<128x128xbf16>
    %41 = vector.shape_cast %38 : vector<128x128xbf16> to vector<1x128x128xbf16>
    tpu.vector_store %arg5[%c0_26, %c0_27, %c0_28], %41 {strides = array<i32>} : memref<1x128x128xbf16, #tpu.memory_space<vmem>>, vector<1x128x128xbf16>,
    return
  }
  func.func @transform_0(%arg0: i32, %arg1: i32) -> (i32, i32, i32, i32) {
    %c0_i32 = arith.constant 0 : i32
    %c0_i32_0 = arith.constant 0 : i32
    %c0_i32_1 = arith.constant 0 : i32
    return %arg0, %c0_i32, %arg1, %c0_i32_0 : i32, i32, i32, i32
  }
  func.func @transform_1(%arg0: i32, %arg1: i32) -> (i32, i32, i32, i32) {
    %c0_i32 = arith.constant 0 : i32
    %c0_i32_0 = arith.constant 0 : i32
    %c0_i32_1 = arith.constant 0 : i32
    %c0_i32_2 = arith.constant 0 : i32
    return %arg0, %c0_i32, %c0_i32_0, %c0_i32_1 : i32, i32, i32, i32
  }
  func.func @transform_2(%arg0: i32, %arg1: i32) -> (i32, i32, i32, i32) {
    %c0_i32 = arith.constant 0 : i32
    %c0_i32_0 = arith.constant 0 : i32
    %c0_i32_1 = arith.constant 0 : i32
    %c0_i32_2 = arith.constant 0 : i32
    return %arg0, %c0_i32, %c0_i32_0, %c0_i32_1 : i32, i32, i32, i32
  }
  func.func @transform_3(%arg0: i32, %arg1: i32) -> (i32, i32, i32) {
    %c0_i32 = arith.constant 0 : i32
    %c0_i32_0 = arith.constant 0 : i32
    return %arg0, %arg1, %c0_i32 : i32, i32, i32
  }
  func.func @transform_4(%arg0: i32, %arg1: i32) -> (i32, i32, i32, i32) {
    %c0_i32 = arith.constant 0 : i32
    %c0_i32_0 = arith.constant 0 : i32
    %c0_i32_1 = arith.constant 0 : i32
    return %arg0, %c0_i32, %arg1, %c0_i32_0 : i32, i32, i32, i32
  }
}

</mosaic_0001>

<llo_original>
// kernel: tpu_custom_call.1
$region0: #{tpu_custom_call.1}
  #allocation0 [shape = 'u32[]', space=smem, size = 0x4, offset = 0x4, fixed_abs, tag = 'smem constant byte address 0x4 - core index']
  #allocation1 [shape = 'u32[144,128]{1,0:T(1,128)}', space=vmem, size = 0x12000, scoped, tag = 'internal scratch']
  #allocation2 [shape = 'f32[128,128]{1,0:T(8,128)}', space=vmem, size = 0x10000, scoped, tag = 'scratch operand']
  %s0 = inlined_call_operand.vmem [shape: bf16[2,4,128,32], index: 0, kind: input, shape index: {}]
  %s1 = inlined_call_operand.vmem [shape: bf16[2,4,128,32], index: 1, kind: input, shape index: {}]
  %s2 = inlined_call_operand.vmem [shape: bf16[2,4,128,32], index: 2, kind: input, shape index: {}]
  %s3 = inlined_call_operand.hbm [shape: bf16[2,128,128], index: 3, kind: output, shape index: {0}]
  %s4 = inlined_call_operand.hbm [shape: bf16[2,4,128,128], index: 4, kind: output, shape index: {1}]
  %5 = xla_tuple %s3, %s4
  %s6 = sld [smem:[#allocation0]]
  $region53: #{tpu_custom_call.1} parent=0
    _
  %s8 = ssub.s32 1, %s6
  %s9 = scalar_select 0, %s8, %s6
  $region1: #{tpu_custom_call.1} parent=0
    #allocation3 [shape = 'u8[65536]{0}', space=vmem, size = 0x10000, scoped, tag = 'output window, operand 0']
    #allocation4 [shape = 's32[2]{0}', space=sflag, size = 0x8, scoped, tag = 'scoped memory for tpu_custom_call.1']
    #allocation5 [shape = 'u8[262144]{0}', space=vmem, size = 0x40000, scoped, tag = 'output window, operand 1']
    #allocation6 [shape = 's32[2]{0}', space=sflag, size = 0x8, scoped, tag = 'scoped memory for tpu_custom_call.1']
    %10 = vsyncpa [#allocation4], 0
    %s11 = scalar_lea.sflag [#allocation4], 1
    %12 = vsyncpa %s11, 0
    %13 = vsyncpa [#allocation6], 0
    %s14 = scalar_lea.sflag [#allocation6], 1
    %15 = vsyncpa %s14, 0
    loop: start=0, step=1, limit=4
    $region2: #{tpu_custom_call.1} parent=1 // loop_pre_header
      _
    $region3: #{tpu_custom_call.1} parent=1 // loop_header
      %s17 = sphi 0, %s21
      %p18 = scmp.ge.s32.totalorder %s17, 4
      %s24 = sphi 0, %s36
      %s25 = sphi 0, %s32
      %s26 = sphi 0, %s24
      %s27 = sphi 0, %s25
      %s28 = sphi 0, %s26
      %s29 = sphi 0, %s27
      %s41 = sphi 0, %s43
      %s44 = sphi 0, %s41
      %s45 = sphi 0, %s44
      %s61 = sphi 0, %s45
      %s67 = sphi 0, %s69
      %s70 = sphi 0, %s67
      %s71 = sphi 0, %s70
      %s87 = sphi 0, %s71
      %s93 = sphi 0, %s95
      %s96 = sphi 0, %s93
      %s97 = sphi 0, %s96
      %s113 = sphi 0, %s97
      %s121 = sphi 0, %s123
      %s124 = sphi 0, %s121
      %s125 = sphi 0, %s124
      %s141 = sphi 0, %s125
      %s149 = sphi 0, %s151
      %s152 = sphi 0, %s149
      %s153 = sphi 0, %s152
      %s169 = sphi 0, %s153
    $region4: #{tpu_custom_call.1} parent=1 // loop_header_branch
      %20 = sbr.rel (%p18) target = $region8
    $region5: #{tpu_custom_call.1} parent=1 // loop_body
      %s22 = ssub.s32 %s17, 1
      %s23 = ssub.s32 %s17, 2
      %s30 = sadd.s32 1, %s25
      %p31 = scmp.ge.s32.totalorder %s30, 1
      %s32 = scalar_select %p31, 0, %s30
      %s33 = sadd.s32 1, %s24
      %s34 = scalar_select %p31, %s33, %s24
      %p35 = scmp.ge.s32.totalorder %s34, 2
      %s36 = scalar_select %p35, 0, %s34
      %s37 = ssub.s32 %s24, %s36
      %s38 = ssub.s32 %s25, %s32
      %s39 = sor.u32 %s37, %s38
      %p40 = scmp.eq.s32.totalorder %s39, 0
      %s42 = sadd.s32 %s41, 1
      %s43 = scalar_select %p40, %s41, %s42
      %p46 = pneg %p40
      %p47 = scmp.eq.s32.totalorder %s17, 1
      %p48 = por %p46, %p47
      %p49 = scmp.ne.s32.totalorder %s41, %s44
      %p50 = scmp.eq.s32.totalorder %s17, 0
      %p51 = por %p49, %p50
      %p52 = scmp.ne.s32.totalorder %s41, %s44
      %p53 = scmp.eq.s32.totalorder %s22, 1
      %p54 = por %p52, %p53
      %p55 = scmp.ne.s32.totalorder %s44, %s45
      %p56 = scmp.eq.s32.totalorder %s22, 0
      %p57 = por %p55, %p56
      %p58 = scmp.ne.s32.totalorder %s44, %s45
      %p59 = scmp.eq.s32.totalorder %s23, 1
      %p60 = por %p58, %p59
      %p62 = scmp.ne.s32.totalorder %s45, %s61
      %p63 = scmp.eq.s32.totalorder %s23, 0
      %p64 = por %p62, %p63
      %s65 = ssub.s32 %s24, %s36
      %p66 = scmp.eq.s32.totalorder %s65, 0
      %s68 = sadd.s32 %s67, 1
      %s69 = scalar_select %p66, %s67, %s68
      %p72 = pneg %p66
      %p73 = scmp.eq.s32.totalorder %s17, 1
      %p74 = por %p72, %p73
      %p75 = scmp.ne.s32.totalorder %s67, %s70
      %p76 = scmp.eq.s32.totalorder %s17, 0
      %p77 = por %p75, %p76
      %p78 = scmp.ne.s32.totalorder %s67, %s70
      %p79 = scmp.eq.s32.totalorder %s22, 1
      %p80 = por %p78, %p79
      %p81 = scmp.ne.s32.totalorder %s70, %s71
      %p82 = scmp.eq.s32.totalorder %s22, 0
      %p83 = por %p81, %p82
      %p84 = scmp.ne.s32.totalorder %s70, %s71
      %p85 = scmp.eq.s32.totalorder %s23, 1
      %p86 = por %p84, %p85
      %p88 = scmp.ne.s32.totalorder %s71, %s87
      %p89 = scmp.eq.s32.totalorder %s23, 0
      %p90 = por %p88, %p89
      %s91 = ssub.s32 %s24, %s36
      %p92 = scmp.eq.s32.totalorder %s91, 0
      %s94 = sadd.s32 %s93, 1
      %s95 = scalar_select %p92, %s93, %s94
      %p98 = pneg %p92
      %p99 = scmp.eq.s32.totalorder %s17, 1
      %p100 = por %p98, %p99
      %p101 = scmp.ne.s32.totalorder %s93, %s96
      %p102 = scmp.eq.s32.totalorder %s17, 0
      %p103 = por %p101, %p102
      %p104 = scmp.ne.s32.totalorder %s93, %s96
      %p105 = scmp.eq.s32.totalorder %s22, 1
      %p106 = por %p104, %p105
      %p107 = scmp.ne.s32.totalorder %s96, %s97
      %p108 = scmp.eq.s32.totalorder %s22, 0
      %p109 = por %p107, %p108
      %p110 = scmp.ne.s32.totalorder %s96, %s97
      %p111 = scmp.eq.s32.totalorder %s23, 1
      %p112 = por %p110, %p111
      %p114 = scmp.ne.s32.totalorder %s97, %s113
      %p115 = scmp.eq.s32.totalorder %s23, 0
      %p116 = por %p114, %p115
      %s117 = ssub.s32 %s24, %s36
      %s118 = ssub.s32 %s25, %s32
      %s119 = sor.u32 %s117, %s118
      %p120 = scmp.eq.s32.totalorder %s119, 0
      %s122 = sadd.s32 %s121, 1
      %s123 = scalar_select %p120, %s121, %s122
      %p126 = pneg %p120
      %p127 = scmp.eq.s32.totalorder %s17, 1
      %p128 = por %p126, %p127
      %p129 = scmp.ne.s32.totalorder %s121, %s124
      %p130 = scmp.eq.s32.totalorder %s17, 0
      %p131 = por %p129, %p130
      %p132 = scmp.ne.s32.totalorder %s121, %s124
      %p133 = scmp.eq.s32.totalorder %s22, 1
      %p134 = por %p132, %p133
      %p135 = scmp.ne.s32.totalorder %s124, %s125
      %p136 = scmp.eq.s32.totalorder %s22, 0
      %p137 = por %p135, %p136
      %p138 = scmp.ne.s32.totalorder %s124, %s125
      %p139 = scmp.eq.s32.totalorder %s23, 1
      %p140 = por %p138, %p139
      %p142 = scmp.ne.s32.totalorder %s125, %s141
      %p143 = scmp.eq.s32.totalorder %s23, 0
      %p144 = por %p142, %p143
      %s145 = ssub.s32 %s24, %s36
      %s146 = ssub.s32 %s25, %s32
      %s147 = sor.u32 %s145, %s146
      %p148 = scmp.eq.s32.totalorder %s147, 0
      %s150 = sadd.s32 %s149, 1
      %s151 = scalar_select %p148, %s149, %s150
      %p154 = pneg %p148
      %p155 = scmp.eq.s32.totalorder %s17, 1
      %p156 = por %p154, %p155
      %p157 = scmp.ne.s32.totalorder %s149, %s152
      %p158 = scmp.eq.s32.totalorder %s17, 0
      %p159 = por %p157, %p158
      %p160 = scmp.ne.s32.totalorder %s149, %s152
      %p161 = scmp.eq.s32.totalorder %s22, 1
      %p162 = por %p160, %p161
      %p163 = scmp.ne.s32.totalorder %s152, %s153
      %p164 = scmp.eq.s32.totalorder %s22, 0
      %p165 = por %p163, %p164
      %p166 = scmp.ne.s32.totalorder %s152, %s153
      %p167 = scmp.eq.s32.totalorder %s23, 1
      %p168 = por %p166, %p167
      %p170 = scmp.ne.s32.totalorder %s153, %s169
      %p171 = scmp.eq.s32.totalorder %s23, 0
      %p172 = por %p170, %p171
      %p173 = scmp.le.s32.totalorder 1, %s17
      %p174 = scmp.lt.s32.totalorder %s17, 3
      %p175 = pnand %p173, %p174
      %p176 = pneg %p175
      // Predicated region
      $region9: #{tpu_custom_call.1} parent=5 // pred_check
        _
      $region10: #{tpu_custom_call.1} parent=5 // pred_check_branch
        %178 = sbr.rel (%p175) target = $region12
      $region11: #{tpu_custom_call.1} parent=5 // pred_region
        %s179 = ssub.s32 %s17, 1
      $region12: #{tpu_custom_call.1} parent=5 // pred_fallthru
        _
      %p180 = scmp.lt.s32.totalorder %s17, 2
      // Predicated region
      $region13: #{tpu_custom_call.1} parent=5 // pred_check
        %p181 = pneg %p180
      $region14: #{tpu_custom_call.1} parent=5 // pred_check_branch
        %183 = sbr.rel (%p181) target = $region16
      $region15: #{tpu_custom_call.1} parent=5 // pred_region
        // Predicated region
        $region17: #{tpu_custom_call.1} parent=15 // pred_check
          %p184 = pneg %p51
        $region18: #{tpu_custom_call.1} parent=15 // pred_check_branch
          %186 = sbr.rel (%p184) target = $region20
        $region19: #{tpu_custom_call.1} parent=15 // pred_region
          %s187 = smul.u32 16, %s25
          %p188 = scmp.lt.s32.totalorder %s24, 1
          %s189 = scalar_select %p188, %s24, 1
          %p190 = scmp.lt.s32.totalorder %s187, 15
          %s191 = scalar_select %p190, %s187, 15
          %s192 = smul.addr %s189, 64
          %s193 = sadd.s32 %s191, %s192
          %s194 = smul.addr %s193, 4
          %s195 = scalar_lea.vmem %s0, %s194
          %s196 = smul.u32 16, %s25
        $region20: #{tpu_custom_call.1} parent=15 // pred_fallthru
          _
        // Predicated region
        $region21: #{tpu_custom_call.1} parent=15 // pred_check
          %p197 = pneg %p77
        $region22: #{tpu_custom_call.1} parent=15 // pred_check_branch
          %199 = sbr.rel (%p197) target = $region24
        $region23: #{tpu_custom_call.1} parent=15 // pred_region
          %p200 = scmp.lt.s32.totalorder %s24, 1
          %s201 = scalar_select %p200, %s24, 1
          %s202 = smul.addr %s201, 64
          %s203 = smul.addr %s202, 4
          %s204 = scalar_lea.vmem %s1, %s203
        $region24: #{tpu_custom_call.1} parent=15 // pred_fallthru
          _
        // Predicated region
        $region25: #{tpu_custom_call.1} parent=15 // pred_check
          %p205 = pneg %p103
        $region26: #{tpu_custom_call.1} parent=15 // pred_check_branch
          %207 = sbr.rel (%p205) target = $region28
        $region27: #{tpu_custom_call.1} parent=15 // pred_region
          %p208 = scmp.lt.s32.totalorder %s24, 1
          %s209 = scalar_select %p208, %s24, 1
          %s210 = smul.addr %s209, 64
          %s211 = smul.addr %s210, 4
          %s212 = scalar_lea.vmem %s2, %s211
        $region28: #{tpu_custom_call.1} parent=15 // pred_fallthru
          _
      $region16: #{tpu_custom_call.1} parent=5 // pred_fallthru
        _
      %p213 = scmp.le.s32.totalorder 1, %s17
      %p214 = scmp.lt.s32.totalorder %s17, 3
      %p215 = pnand %p213, %p214
      %p216 = pneg %p215
      // Predicated region
      $region29: #{tpu_custom_call.1} parent=5 // pred_check
        _
      $region30: #{tpu_custom_call.1} parent=5 // pred_check_branch
        %218 = sbr.rel (%p215) target = $region32
      $region31: #{tpu_custom_call.1} parent=5 // pred_region
        %s219 = ssub.s32 %s17, 1
        %s220 = smul.u32 16, %s27
        %p221 = scmp.lt.s32.totalorder %s26, 1
        %s222 = scalar_select %p221, %s26, 1
        %p223 = scmp.lt.s32.totalorder %s220, 15
        %s224 = scalar_select %p223, %s220, 15
        %s225 = smul.addr %s222, 64
        %s226 = sadd.s32 %s224, %s225
        %s227 = smul.addr %s226, 4
        %s228 = scalar_lea.vmem %s0, %s227
        %p229 = pneg %p57
        %p230 = pneg %p54
        %p231 = scmp.lt.s32.totalorder %s26, 1
        %s232 = scalar_select %p231, %s26, 1
        %s233 = smul.addr %s232, 64
        %s234 = smul.addr %s233, 4
        %s235 = scalar_lea.vmem %s1, %s234
        %p236 = pneg %p83
        %p237 = pneg %p80
        %p238 = scmp.lt.s32.totalorder %s26, 1
        %s239 = scalar_select %p238, %s26, 1
        %s240 = smul.addr %s239, 64
        %s241 = smul.addr %s240, 4
        %s242 = scalar_lea.vmem %s2, %s241
        %p243 = pneg %p109
        %p244 = pneg %p106
        %p245 = pneg %p137
        %p246 = pneg %p134
        %s247 = sand.u32 %s124, 1
        %s248 = scalar_lea.sflag [#allocation4], %s247
        %s249 = sand.u32 %s124, 1
        %s250 = smul.addr %s249, 64
        %s251 = scalar_lea.vmem [#allocation3], %s250
        %p252 = pneg %p165
        %p253 = pneg %p162
        %s254 = sand.u32 %s152, 1
        %s255 = scalar_lea.sflag [#allocation6], %s254
        %s256 = sand.u32 %s152, 1
        %s257 = smul.addr %s256, 256
        %s258 = scalar_lea.vmem [#allocation5], %s257
        %s259 = smul.u32 16, %s27
        %p260 = scmp.lt.s32.totalorder %s26, 1
        %s261 = scalar_select %p260, %s26, 1
        %p262 = scmp.lt.s32.totalorder %s259, 15
        %s263 = scalar_select %p262, %s259, 15
        %s264 = smul.addr %s261, 64
        %s265 = sadd.s32 %s263, %s264
        %s266 = smul.addr %s265, 4
        %s267 = scalar_lea.vmem %s0, %s266
        %s268 = smul.u32 16, %s27
        %p269 = scmp.lt.s32.totalorder %s26, 1
        %s270 = scalar_select %p269, %s26, 1
        %s271 = smul.addr %s270, 64
        %s272 = smul.addr %s271, 4
        %s273 = scalar_lea.vmem %s1, %s272
        %p274 = scmp.lt.s32.totalorder %s26, 1
        %s275 = scalar_select %p274, %s26, 1
        %s276 = smul.addr %s275, 64
        %s277 = smul.addr %s276, 4
        %s278 = scalar_lea.vmem %s2, %s277
        %s279 = smul.u32 16, %s27
        %s280 = smul.u32 16, %s27
        %v282 = vld [vmem:[%s267] sm:$0xf]
        %v283 = vld [vmem:[%s267 + $0x4] sm:$0xf]
        %v284 = vld [vmem:[%s267 + $0x8] sm:$0xf]
        %v285 = vld [vmem:[%s267 + $0xc] sm:$0xf]
        %v286 = vld [vmem:[%s267 + $0x10] sm:$0xf]
        %v287 = vld [vmem:[%s267 + $0x14] sm:$0xf]
        %v288 = vld [vmem:[%s267 + $0x18] sm:$0xf]
        %v289 = vld [vmem:[%s267 + $0x1c] sm:$0xf]
        %v290 = vld [vmem:[%s267 + $0x20] sm:$0xf]
        %v291 = vld [vmem:[%s267 + $0x24] sm:$0xf]
        %v292 = vld [vmem:[%s267 + $0x28] sm:$0xf]
        %v293 = vld [vmem:[%s267 + $0x2c] sm:$0xf]
        %v294 = vld [vmem:[%s267 + $0x30] sm:$0xf]
        %v295 = vld [vmem:[%s267 + $0x34] sm:$0xf]
        %v296 = vld [vmem:[%s267 + $0x38] sm:$0xf]
        %v297 = vld [vmem:[%s267 + $0x3c] sm:$0xf]
        %v298 = vld [vmem:[%s267 + $0x40] sm:$0xf]
        %v299 = vld [vmem:[%s267 + $0x44] sm:$0xf]
        %v300 = vld [vmem:[%s267 + $0x48] sm:$0xf]
        %v301 = vld [vmem:[%s267 + $0x4c] sm:$0xf]
        %v302 = vld [vmem:[%s267 + $0x50] sm:$0xf]
        %v303 = vld [vmem:[%s267 + $0x54] sm:$0xf]
        %v304 = vld [vmem:[%s267 + $0x58] sm:$0xf]
        %v305 = vld [vmem:[%s267 + $0x5c] sm:$0xf]
        %v306 = vld [vmem:[%s267 + $0x60] sm:$0xf]
        %v307 = vld [vmem:[%s267 + $0x64] sm:$0xf]
        %v308 = vld [vmem:[%s267 + $0x68] sm:$0xf]
        %v309 = vld [vmem:[%s267 + $0x6c] sm:$0xf]
        %v310 = vld [vmem:[%s267 + $0x70] sm:$0xf]
        %v311 = vld [vmem:[%s267 + $0x74] sm:$0xf]
        %v312 = vld [vmem:[%s267 + $0x78] sm:$0xf]
        %v313 = vld [vmem:[%s267 + $0x7c] sm:$0xf]
        %v314 = vld [vmem:[%s267 + $0x80] sm:$0xf]
        %v315 = vld [vmem:[%s267 + $0x84] sm:$0xf]
        %v316 = vld [vmem:[%s267 + $0x88] sm:$0xf]
        %v317 = vld [vmem:[%s267 + $0x8c] sm:$0xf]
        %v318 = vld [vmem:[%s267 + $0x90] sm:$0xf]
        %v319 = vld [vmem:[%s267 + $0x94] sm:$0xf]
        %v320 = vld [vmem:[%s267 + $0x98] sm:$0xf]
        %v321 = vld [vmem:[%s267 + $0x9c] sm:$0xf]
        %v322 = vld [vmem:[%s267 + $0xa0] sm:$0xf]
        %v323 = vld [vmem:[%s267 + $0xa4] sm:$0xf]
        %v324 = vld [vmem:[%s267 + $0xa8] sm:$0xf]
        %v325 = vld [vmem:[%s267 + $0xac] sm:$0xf]
        %v326 = vld [vmem:[%s267 + $0xb0] sm:$0xf]
        %v327 = vld [vmem:[%s267 + $0xb4] sm:$0xf]
        %v328 = vld [vmem:[%s267 + $0xb8] sm:$0xf]
        %v329 = vld [vmem:[%s267 + $0xbc] sm:$0xf]
        %v330 = vld [vmem:[%s267 + $0xc0] sm:$0xf]
        %v331 = vld [vmem:[%s267 + $0xc4] sm:$0xf]
        %v332 = vld [vmem:[%s267 + $0xc8] sm:$0xf]
        %v333 = vld [vmem:[%s267 + $0xcc] sm:$0xf]
        %v334 = vld [vmem:[%s267 + $0xd0] sm:$0xf]
        %v335 = vld [vmem:[%s267 + $0xd4] sm:$0xf]
        %v336 = vld [vmem:[%s267 + $0xd8] sm:$0xf]
        %v337 = vld [vmem:[%s267 + $0xdc] sm:$0xf]
        %v338 = vld [vmem:[%s267 + $0xe0] sm:$0xf]
        %v339 = vld [vmem:[%s267 + $0xe4] sm:$0xf]
        %v340 = vld [vmem:[%s267 + $0xe8] sm:$0xf]
        %v341 = vld [vmem:[%s267 + $0xec] sm:$0xf]
        %v342 = vld [vmem:[%s267 + $0xf0] sm:$0xf]
        %v343 = vld [vmem:[%s267 + $0xf4] sm:$0xf]
        %v344 = vld [vmem:[%s267 + $0xf8] sm:$0xf]
        %v345 = vld [vmem:[%s267 + $0xfc] sm:$0xf]
        %v346 = vld [vmem:[%s273] sm:$0xf]
        %v347 = vld [vmem:[%s273 + $0x4] sm:$0xf]
        %v348 = vld [vmem:[%s273 + $0x8] sm:$0xf]
        %v349 = vld [vmem:[%s273 + $0xc] sm:$0xf]
        %v350 = vld [vmem:[%s273 + $0x10] sm:$0xf]
        %v351 = vld [vmem:[%s273 + $0x14] sm:$0xf]
        %v352 = vld [vmem:[%s273 + $0x18] sm:$0xf]
        %v353 = vld [vmem:[%s273 + $0x1c] sm:$0xf]
        %v354 = vld [vmem:[%s273 + $0x20] sm:$0xf]
        %v355 = vld [vmem:[%s273 + $0x24] sm:$0xf]
        %v356 = vld [vmem:[%s273 + $0x28] sm:$0xf]
        %v357 = vld [vmem:[%s273 + $0x2c] sm:$0xf]
        %v358 = vld [vmem:[%s273 + $0x30] sm:$0xf]
        %v359 = vld [vmem:[%s273 + $0x34] sm:$0xf]
        %v360 = vld [vmem:[%s273 + $0x38] sm:$0xf]
        %v361 = vld [vmem:[%s273 + $0x3c] sm:$0xf]
        %v362 = vld [vmem:[%s273 + $0x40] sm:$0xf]
        %v363 = vld [vmem:[%s273 + $0x44] sm:$0xf]
        %v364 = vld [vmem:[%s273 + $0x48] sm:$0xf]
        %v365 = vld [vmem:[%s273 + $0x4c] sm:$0xf]
        %v366 = vld [vmem:[%s273 + $0x50] sm:$0xf]
        %v367 = vld [vmem:[%s273 + $0x54] sm:$0xf]
        %v368 = vld [vmem:[%s273 + $0x58] sm:$0xf]
        %v369 = vld [vmem:[%s273 + $0x5c] sm:$0xf]
        %v370 = vld [vmem:[%s273 + $0x60] sm:$0xf]
        %v371 = vld [vmem:[%s273 + $0x64] sm:$0xf]
        %v372 = vld [vmem:[%s273 + $0x68] sm:$0xf]
        %v373 = vld [vmem:[%s273 + $0x6c] sm:$0xf]
        %v374 = vld [vmem:[%s273 + $0x70] sm:$0xf]
        %v375 = vld [vmem:[%s273 + $0x74] sm:$0xf]
        %v376 = vld [vmem:[%s273 + $0x78] sm:$0xf]
        %v377 = vld [vmem:[%s273 + $0x7c] sm:$0xf]
        %v378 = vld [vmem:[%s273 + $0x80] sm:$0xf]
        %v379 = vld [vmem:[%s273 + $0x84] sm:$0xf]
        %v380 = vld [vmem:[%s273 + $0x88] sm:$0xf]
        %v381 = vld [vmem:[%s273 + $0x8c] sm:$0xf]
        %v382 = vld [vmem:[%s273 + $0x90] sm:$0xf]
        %v383 = vld [vmem:[%s273 + $0x94] sm:$0xf]
        %v384 = vld [vmem:[%s273 + $0x98] sm:$0xf]
        %v385 = vld [vmem:[%s273 + $0x9c] sm:$0xf]
        %v386 = vld [vmem:[%s273 + $0xa0] sm:$0xf]
        %v387 = vld [vmem:[%s273 + $0xa4] sm:$0xf]
        %v388 = vld [vmem:[%s273 + $0xa8] sm:$0xf]
        %v389 = vld [vmem:[%s273 + $0xac] sm:$0xf]
        %v390 = vld [vmem:[%s273 + $0xb0] sm:$0xf]
        %v391 = vld [vmem:[%s273 + $0xb4] sm:$0xf]
        %v392 = vld [vmem:[%s273 + $0xb8] sm:$0xf]
        %v393 = vld [vmem:[%s273 + $0xbc] sm:$0xf]
        %v394 = vld [vmem:[%s273 + $0xc0] sm:$0xf]
        %v395 = vld [vmem:[%s273 + $0xc4] sm:$0xf]
        %v396 = vld [vmem:[%s273 + $0xc8] sm:$0xf]
        %v397 = vld [vmem:[%s273 + $0xcc] sm:$0xf]
        %v398 = vld [vmem:[%s273 + $0xd0] sm:$0xf]
        %v399 = vld [vmem:[%s273 + $0xd4] sm:$0xf]
        %v400 = vld [vmem:[%s273 + $0xd8] sm:$0xf]
        %v401 = vld [vmem:[%s273 + $0xdc] sm:$0xf]
        %v402 = vld [vmem:[%s273 + $0xe0] sm:$0xf]
        %v403 = vld [vmem:[%s273 + $0xe4] sm:$0xf]
        %v404 = vld [vmem:[%s273 + $0xe8] sm:$0xf]
        %v405 = vld [vmem:[%s273 + $0xec] sm:$0xf]
        %v406 = vld [vmem:[%s273 + $0xf0] sm:$0xf]
        %v407 = vld [vmem:[%s273 + $0xf4] sm:$0xf]
        %v408 = vld [vmem:[%s273 + $0xf8] sm:$0xf]
        %v409 = vld [vmem:[%s273 + $0xfc] sm:$0xf]
        %v410 = vld [vmem:[%s278] sm:$0xf]
        %v411 = vld [vmem:[%s278 + $0x4] sm:$0xf]
        %v412 = vld [vmem:[%s278 + $0x8] sm:$0xf]
        %v413 = vld [vmem:[%s278 + $0xc] sm:$0xf]
        %v414 = vld [vmem:[%s278 + $0x10] sm:$0xf]
        %v415 = vld [vmem:[%s278 + $0x14] sm:$0xf]
        %v416 = vld [vmem:[%s278 + $0x18] sm:$0xf]
        %v417 = vld [vmem:[%s278 + $0x1c] sm:$0xf]
        %v418 = vld [vmem:[%s278 + $0x20] sm:$0xf]
        %v419 = vld [vmem:[%s278 + $0x24] sm:$0xf]
        %v420 = vld [vmem:[%s278 + $0x28] sm:$0xf]
        %v421 = vld [vmem:[%s278 + $0x2c] sm:$0xf]
        %v422 = vld [vmem:[%s278 + $0x30] sm:$0xf]
        %v423 = vld [vmem:[%s278 + $0x34] sm:$0xf]
        %v424 = vld [vmem:[%s278 + $0x38] sm:$0xf]
        %v425 = vld [vmem:[%s278 + $0x3c] sm:$0xf]
        %v426 = vld [vmem:[%s278 + $0x40] sm:$0xf]
        %v427 = vld [vmem:[%s278 + $0x44] sm:$0xf]
        %v428 = vld [vmem:[%s278 + $0x48] sm:$0xf]
        %v429 = vld [vmem:[%s278 + $0x4c] sm:$0xf]
        %v430 = vld [vmem:[%s278 + $0x50] sm:$0xf]
        %v431 = vld [vmem:[%s278 + $0x54] sm:$0xf]
        %v432 = vld [vmem:[%s278 + $0x58] sm:$0xf]
        %v433 = vld [vmem:[%s278 + $0x5c] sm:$0xf]
        %v434 = vld [vmem:[%s278 + $0x60] sm:$0xf]
        %v435 = vld [vmem:[%s278 + $0x64] sm:$0xf]
        %v436 = vld [vmem:[%s278 + $0x68] sm:$0xf]
        %v437 = vld [vmem:[%s278 + $0x6c] sm:$0xf]
        %v438 = vld [vmem:[%s278 + $0x70] sm:$0xf]
        %v439 = vld [vmem:[%s278 + $0x74] sm:$0xf]
        %v440 = vld [vmem:[%s278 + $0x78] sm:$0xf]
        %v441 = vld [vmem:[%s278 + $0x7c] sm:$0xf]
        %v442 = vld [vmem:[%s278 + $0x80] sm:$0xf]
        %v443 = vld [vmem:[%s278 + $0x84] sm:$0xf]
        %v444 = vld [vmem:[%s278 + $0x88] sm:$0xf]
        %v445 = vld [vmem:[%s278 + $0x8c] sm:$0xf]
        %v446 = vld [vmem:[%s278 + $0x90] sm:$0xf]
        %v447 = vld [vmem:[%s278 + $0x94] sm:$0xf]
        %v448 = vld [vmem:[%s278 + $0x98] sm:$0xf]
        %v449 = vld [vmem:[%s278 + $0x9c] sm:$0xf]
        %v450 = vld [vmem:[%s278 + $0xa0] sm:$0xf]
        %v451 = vld [vmem:[%s278 + $0xa4] sm:$0xf]
        %v452 = vld [vmem:[%s278 + $0xa8] sm:$0xf]
        %v453 = vld [vmem:[%s278 + $0xac] sm:$0xf]
        %v454 = vld [vmem:[%s278 + $0xb0] sm:$0xf]
        %v455 = vld [vmem:[%s278 + $0xb4] sm:$0xf]
        %v456 = vld [vmem:[%s278 + $0xb8] sm:$0xf]
        %v457 = vld [vmem:[%s278 + $0xbc] sm:$0xf]
        %v458 = vld [vmem:[%s278 + $0xc0] sm:$0xf]
        %v459 = vld [vmem:[%s278 + $0xc4] sm:$0xf]
        %v460 = vld [vmem:[%s278 + $0xc8] sm:$0xf]
        %v461 = vld [vmem:[%s278 + $0xcc] sm:$0xf]
        %v462 = vld [vmem:[%s278 + $0xd0] sm:$0xf]
        %v463 = vld [vmem:[%s278 + $0xd4] sm:$0xf]
        %v464 = vld [vmem:[%s278 + $0xd8] sm:$0xf]
        %v465 = vld [vmem:[%s278 + $0xdc] sm:$0xf]
        %v466 = vld [vmem:[%s278 + $0xe0] sm:$0xf]
        %v467 = vld [vmem:[%s278 + $0xe4] sm:$0xf]
        %v468 = vld [vmem:[%s278 + $0xe8] sm:$0xf]
        %v469 = vld [vmem:[%s278 + $0xec] sm:$0xf]
        %v470 = vld [vmem:[%s278 + $0xf0] sm:$0xf]
        %v471 = vld [vmem:[%s278 + $0xf4] sm:$0xf]
        %v472 = vld [vmem:[%s278 + $0xf8] sm:$0xf]
        %v473 = vld [vmem:[%s278 + $0xfc] sm:$0xf]
        %v490 = vunpack.c.l.b16 %v282
        %v491 = vunpack.c.l.b16 %v283
        %v492 = vunpack.c.l.b16 %v284
        %v493 = vunpack.c.l.b16 %v285
        %v494 = vunpack.c.l.b16 %v286
        %v495 = vunpack.c.l.b16 %v287
        %v496 = vunpack.c.l.b16 %v288
        %v497 = vunpack.c.l.b16 %v289
        %v498 = vunpack.c.l.b16 %v290
        %v499 = vunpack.c.l.b16 %v291
        %v500 = vunpack.c.l.b16 %v292
        %v501 = vunpack.c.l.b16 %v293
        %v502 = vunpack.c.l.b16 %v294
        %v503 = vunpack.c.l.b16 %v295
        %v504 = vunpack.c.l.b16 %v296
        %v505 = vunpack.c.l.b16 %v297
        %v506 = vpack.c.b16 %v491, %v490
        %v507 = vpack.c.b16 %v493, %v492
        %v508 = vpack.c.b16 %v495, %v494
        %v509 = vpack.c.b16 %v497, %v496
        %v510 = vpack.c.b16 %v499, %v498
        %v511 = vpack.c.b16 %v501, %v500
        %v512 = vpack.c.b16 %v503, %v502
        %v513 = vpack.c.b16 %v505, %v504
        %v530 = vunpack.c.l.b16 %v346
        %v531 = vunpack.c.l.b16 %v347
        %v532 = vunpack.c.l.b16 %v348
        %v533 = vunpack.c.l.b16 %v349
        %v534 = vunpack.c.l.b16 %v350
        %v535 = vunpack.c.l.b16 %v351
        %v536 = vunpack.c.l.b16 %v352
        %v537 = vunpack.c.l.b16 %v353
        %v538 = vunpack.c.l.b16 %v354
        %v539 = vunpack.c.l.b16 %v355
        %v540 = vunpack.c.l.b16 %v356
        %v541 = vunpack.c.l.b16 %v357
        %v542 = vunpack.c.l.b16 %v358
        %v543 = vunpack.c.l.b16 %v359
        %v544 = vunpack.c.l.b16 %v360
        %v545 = vunpack.c.l.b16 %v361
        %v546 = vpack.c.b16 %v531, %v530
        %v547 = vpack.c.b16 %v533, %v532
        %v548 = vpack.c.b16 %v535, %v534
        %v549 = vpack.c.b16 %v537, %v536
        %v550 = vpack.c.b16 %v539, %v538
        %v551 = vpack.c.b16 %v541, %v540
        %v552 = vpack.c.b16 %v543, %v542
        %v553 = vpack.c.b16 %v545, %v544
        %vm554 = vcmask 261120
        %v556 = vsel %vm554, %v506, 0
        %v559 = vsel %vm554, %v507, 0
        %v562 = vsel %vm554, %v508, 0
        %v565 = vsel %vm554, %v509, 0
        %v568 = vsel %vm554, %v510, 0
        %v571 = vsel %vm554, %v511, 0
        %v574 = vsel %vm554, %v512, 0
        %v577 = vsel %vm554, %v513, 0
        %v580 = vsel %vm554, %v546, 0
        %v583 = vsel %vm554, %v547, 0
        %v586 = vsel %vm554, %v548, 0
        %v589 = vsel %vm554, %v549, 0
        %v592 = vsel %vm554, %v550, 0
        %v595 = vsel %vm554, %v551, 0
        %v598 = vsel %vm554, %v552, 0
        %v601 = vsel %vm554, %v553, 0
        %603 = vmatprep.subr.bf16.mxu0 0
        %604 = vmatpush1.bf16.xpose.msra.mxu0 %v601
        %605 = vmatprep.subr.bf16.mxu0 0
        %606 = vmatpush1.bf16.xpose.msra.mxu0 %v598
        %607 = vmatprep.subr.bf16.mxu0 0
        %608 = vmatpush1.bf16.xpose.msra.mxu0 %v595
        %609 = vmatprep.subr.bf16.mxu0 0
        %610 = vmatpush1.bf16.xpose.msra.mxu0 %v592
        %611 = vmatprep.subr.bf16.mxu0 0
        %612 = vmatpush1.bf16.xpose.msra.mxu0 %v589
        %613 = vmatprep.subr.bf16.mxu0 0
        %614 = vmatpush1.bf16.xpose.msra.mxu0 %v586
        %615 = vmatprep.subr.bf16.mxu0 0
        %616 = vmatpush1.bf16.xpose.msra.mxu0 %v583
        %617 = vmatprep.subr.bf16.mxu0 0
        %618 = vmatpush1.bf16.xpose.msra.mxu0 %v580
        %619 = vmatprep.subr.bf16.mxu0 0
        %620 = vmatpush2.bf16.xpose.msra.mxu0 0
        %621 = vmatprep.subr.bf16.mxu0 0
        %622 = vmatpush2.bf16.xpose.msra.mxu0 0
        %623 = vmatprep.subr.bf16.mxu0 0
        %624 = vmatpush2.bf16.xpose.msra.mxu0 0
        %625 = vmatprep.subr.bf16.mxu0 0
        %626 = vmatpush2.bf16.xpose.msra.mxu0 0
        %627 = vmatprep.subr.bf16.mxu0 0
        %628 = vmatpush2.bf16.xpose.msra.mxu0 0
        %629 = vmatprep.subr.bf16.mxu0 0
        %630 = vmatpush2.bf16.xpose.msra.mxu0 0
        %631 = vmatprep.subr.bf16.mxu0 0
        %632 = vmatpush2.bf16.xpose.msra.mxu0 0
        %633 = vmatprep.subr.bf16.mxu0 0
        %634 = vmatpush2.bf16.xpose.msra.mxu0 0
        %635 = vmatprep.mubr.bf16.mxu0 0
        %636 = vmatmul.mubr.bf16.gmra.mxu0 %v556
        %v637 = vpop.f32.mrf.mxu0
        %v638 = vadd.f32 0.0, %v637
        %v639 = vpop.f32.mrf.mxu0
        %v640 = vpop.f32.mrf.mxu0
        %v641 = vadd.f32 0.0, %v640
        %v642 = vpop.f32.mrf.mxu0
        %643 = vmatprep.mubr.bf16.mxu0 0
        %644 = vmatmul.mubr.bf16.gmra.mxu0 %v559
        %v645 = vpop.f32.mrf.mxu0
        %v646 = vadd.f32 0.0, %v645
        %v647 = vpop.f32.mrf.mxu0
        %v648 = vpop.f32.mrf.mxu0
        %v649 = vadd.f32 0.0, %v648
        %v650 = vpop.f32.mrf.mxu0
        %651 = vmatprep.mubr.bf16.mxu0 0
        %652 = vmatmul.mubr.bf16.gmra.mxu0 %v562
        %v653 = vpop.f32.mrf.mxu0
        %v654 = vadd.f32 0.0, %v653
        %v655 = vpop.f32.mrf.mxu0
        %v656 = vpop.f32.mrf.mxu0
        %v657 = vadd.f32 0.0, %v656
        %v658 = vpop.f32.mrf.mxu0
        %659 = vmatprep.mubr.bf16.mxu0 0
        %660 = vmatmul.mubr.bf16.gmra.mxu0 %v565
        %v661 = vpop.f32.mrf.mxu0
        %v662 = vadd.f32 0.0, %v661
        %v663 = vpop.f32.mrf.mxu0
        %v664 = vpop.f32.mrf.mxu0
        %v665 = vadd.f32 0.0, %v664
        %v666 = vpop.f32.mrf.mxu0
        %667 = vmatprep.mubr.bf16.mxu0 0
        %668 = vmatmul.mubr.bf16.gmra.mxu0 %v568
        %v669 = vpop.f32.mrf.mxu0
        %v670 = vadd.f32 0.0, %v669
        %v671 = vpop.f32.mrf.mxu0
        %v672 = vpop.f32.mrf.mxu0
        %v673 = vadd.f32 0.0, %v672
        %v674 = vpop.f32.mrf.mxu0
        %675 = vmatprep.mubr.bf16.mxu0 0
        %676 = vmatmul.mubr.bf16.gmra.mxu0 %v571
        %v677 = vpop.f32.mrf.mxu0
        %v678 = vadd.f32 0.0, %v677
        %v679 = vpop.f32.mrf.mxu0
        %v680 = vpop.f32.mrf.mxu0
        %v681 = vadd.f32 0.0, %v680
        %v682 = vpop.f32.mrf.mxu0
        %683 = vmatprep.mubr.bf16.mxu0 0
        %684 = vmatmul.mubr.bf16.gmra.mxu0 %v574
        %v685 = vpop.f32.mrf.mxu0
        %v686 = vadd.f32 0.0, %v685
        %v687 = vpop.f32.mrf.mxu0
        %v688 = vpop.f32.mrf.mxu0
        %v689 = vadd.f32 0.0, %v688
        %v690 = vpop.f32.mrf.mxu0
        %691 = vmatprep.mubr.bf16.mxu0 0
        %692 = vmatmul.mubr.bf16.gmra.mxu0 %v577
        %v693 = vpop.f32.mrf.mxu0
        %v694 = vadd.f32 0.0, %v693
        %v695 = vpop.f32.mrf.mxu0
        %v696 = vpop.f32.mrf.mxu0
        %v697 = vadd.f32 0.0, %v696
        %v698 = vpop.f32.mrf.mxu0
        %699 = vdwg.mxu0
        %v716 = vunpack.c.l.b16 %v298
        %v717 = vunpack.c.l.b16 %v299
        %v718 = vunpack.c.l.b16 %v300
        %v719 = vunpack.c.l.b16 %v301
        %v720 = vunpack.c.l.b16 %v302
        %v721 = vunpack.c.l.b16 %v303
        %v722 = vunpack.c.l.b16 %v304
        %v723 = vunpack.c.l.b16 %v305
        %v724 = vunpack.c.l.b16 %v306
        %v725 = vunpack.c.l.b16 %v307
        %v726 = vunpack.c.l.b16 %v308
        %v727 = vunpack.c.l.b16 %v309
        %v728 = vunpack.c.l.b16 %v310
        %v729 = vunpack.c.l.b16 %v311
        %v730 = vunpack.c.l.b16 %v312
        %v731 = vunpack.c.l.b16 %v313
        %v732 = vpack.c.b16 %v717, %v716
        %v733 = vpack.c.b16 %v719, %v718
        %v734 = vpack.c.b16 %v721, %v720
        %v735 = vpack.c.b16 %v723, %v722
        %v736 = vpack.c.b16 %v725, %v724
        %v737 = vpack.c.b16 %v727, %v726
        %v738 = vpack.c.b16 %v729, %v728
        %v739 = vpack.c.b16 %v731, %v730
        %v756 = vunpack.c.l.b16 %v362
        %v757 = vunpack.c.l.b16 %v363
        %v758 = vunpack.c.l.b16 %v364
        %v759 = vunpack.c.l.b16 %v365
        %v760 = vunpack.c.l.b16 %v366
        %v761 = vunpack.c.l.b16 %v367
        %v762 = vunpack.c.l.b16 %v368
        %v763 = vunpack.c.l.b16 %v369
        %v764 = vunpack.c.l.b16 %v370
        %v765 = vunpack.c.l.b16 %v371
        %v766 = vunpack.c.l.b16 %v372
        %v767 = vunpack.c.l.b16 %v373
        %v768 = vunpack.c.l.b16 %v374
        %v769 = vunpack.c.l.b16 %v375
        %v770 = vunpack.c.l.b16 %v376
        %v771 = vunpack.c.l.b16 %v377
        %v772 = vpack.c.b16 %v757, %v756
        %v773 = vpack.c.b16 %v759, %v758
        %v774 = vpack.c.b16 %v761, %v760
        %v775 = vpack.c.b16 %v763, %v762
        %v776 = vpack.c.b16 %v765, %v764
        %v777 = vpack.c.b16 %v767, %v766
        %v778 = vpack.c.b16 %v769, %v768
        %v779 = vpack.c.b16 %v771, %v770
        %v781 = vsel %vm554, %v732, 0
        %v784 = vsel %vm554, %v733, 0
        %v787 = vsel %vm554, %v734, 0
        %v790 = vsel %vm554, %v735, 0
        %v793 = vsel %vm554, %v736, 0
        %v796 = vsel %vm554, %v737, 0
        %v799 = vsel %vm554, %v738, 0
        %v802 = vsel %vm554, %v739, 0
        %v805 = vsel %vm554, %v772, 0
        %v808 = vsel %vm554, %v773, 0
        %v811 = vsel %vm554, %v774, 0
        %v814 = vsel %vm554, %v775, 0
        %v817 = vsel %vm554, %v776, 0
        %v820 = vsel %vm554, %v777, 0
        %v823 = vsel %vm554, %v778, 0
        %v826 = vsel %vm554, %v779, 0
        %828 = vmatprep.subr.bf16.mxu0 0
        %829 = vmatpush1.bf16.xpose.msra.mxu0 %v826
        %830 = vmatprep.subr.bf16.mxu0 0
        %831 = vmatpush1.bf16.xpose.msra.mxu0 %v823
        %832 = vmatprep.subr.bf16.mxu0 0
        %833 = vmatpush1.bf16.xpose.msra.mxu0 %v820
        %834 = vmatprep.subr.bf16.mxu0 0
        %835 = vmatpush1.bf16.xpose.msra.mxu0 %v817
        %836 = vmatprep.subr.bf16.mxu0 0
        %837 = vmatpush1.bf16.xpose.msra.mxu0 %v814
        %838 = vmatprep.subr.bf16.mxu0 0
        %839 = vmatpush1.bf16.xpose.msra.mxu0 %v811
        %840 = vmatprep.subr.bf16.mxu0 0
        %841 = vmatpush1.bf16.xpose.msra.mxu0 %v808
        %842 = vmatprep.subr.bf16.mxu0 0
        %843 = vmatpush1.bf16.xpose.msra.mxu0 %v805
        %844 = vmatprep.subr.bf16.mxu0 0
        %845 = vmatpush2.bf16.xpose.msra.mxu0 0
        %846 = vmatprep.subr.bf16.mxu0 0
        %847 = vmatpush2.bf16.xpose.msra.mxu0 0
        %848 = vmatprep.subr.bf16.mxu0 0
        %849 = vmatpush2.bf16.xpose.msra.mxu0 0
        %850 = vmatprep.subr.bf16.mxu0 0
        %851 = vmatpush2.bf16.xpose.msra.mxu0 0
        %852 = vmatprep.subr.bf16.mxu0 0
        %853 = vmatpush2.bf16.xpose.msra.mxu0 0
        %854 = vmatprep.subr.bf16.mxu0 0
        %855 = vmatpush2.bf16.xpose.msra.mxu0 0
        %856 = vmatprep.subr.bf16.mxu0 0
        %857 = vmatpush2.bf16.xpose.msra.mxu0 0
        %858 = vmatprep.subr.bf16.mxu0 0
        %859 = vmatpush2.bf16.xpose.msra.mxu0 0
        %860 = vmatprep.mubr.bf16.mxu0 0
        %861 = vmatmul.mubr.bf16.gmra.mxu0 %v781
        %v862 = vpop.f32.mrf.mxu0
        %v863 = vadd.f32 0.0, %v862
        %v864 = vpop.f32.mrf.mxu0
        %v865 = vpop.f32.mrf.mxu0
        %v866 = vadd.f32 0.0, %v865
        %v867 = vpop.f32.mrf.mxu0
        %868 = vmatprep.mubr.bf16.mxu0 0
        %869 = vmatmul.mubr.bf16.gmra.mxu0 %v784
        %v870 = vpop.f32.mrf.mxu0
        %v871 = vadd.f32 0.0, %v870
        %v872 = vpop.f32.mrf.mxu0
        %v873 = vpop.f32.mrf.mxu0
        %v874 = vadd.f32 0.0, %v873
        %v875 = vpop.f32.mrf.mxu0
        %876 = vmatprep.mubr.bf16.mxu0 0
        %877 = vmatmul.mubr.bf16.gmra.mxu0 %v787
        %v878 = vpop.f32.mrf.mxu0
        %v879 = vadd.f32 0.0, %v878
        %v880 = vpop.f32.mrf.mxu0
        %v881 = vpop.f32.mrf.mxu0
        %v882 = vadd.f32 0.0, %v881
        %v883 = vpop.f32.mrf.mxu0
        %884 = vmatprep.mubr.bf16.mxu0 0
        %885 = vmatmul.mubr.bf16.gmra.mxu0 %v790
        %v886 = vpop.f32.mrf.mxu0
        %v887 = vadd.f32 0.0, %v886
        %v888 = vpop.f32.mrf.mxu0
        %v889 = vpop.f32.mrf.mxu0
        %v890 = vadd.f32 0.0, %v889
        %v891 = vpop.f32.mrf.mxu0
        %892 = vmatprep.mubr.bf16.mxu0 0
        %893 = vmatmul.mubr.bf16.gmra.mxu0 %v793
        %v894 = vpop.f32.mrf.mxu0
        %v895 = vadd.f32 0.0, %v894
        %v896 = vpop.f32.mrf.mxu0
        %v897 = vpop.f32.mrf.mxu0
        %v898 = vadd.f32 0.0, %v897
        %v899 = vpop.f32.mrf.mxu0
        %900 = vmatprep.mubr.bf16.mxu0 0
        %901 = vmatmul.mubr.bf16.gmra.mxu0 %v796
        %v902 = vpop.f32.mrf.mxu0
        %v903 = vadd.f32 0.0, %v902
        %v904 = vpop.f32.mrf.mxu0
        %v905 = vpop.f32.mrf.mxu0
        %v906 = vadd.f32 0.0, %v905
        %v907 = vpop.f32.mrf.mxu0
        %908 = vmatprep.mubr.bf16.mxu0 0
        %909 = vmatmul.mubr.bf16.gmra.mxu0 %v799
        %v910 = vpop.f32.mrf.mxu0
        %v911 = vadd.f32 0.0, %v910
        %v912 = vpop.f32.mrf.mxu0
        %v913 = vpop.f32.mrf.mxu0
        %v914 = vadd.f32 0.0, %v913
        %v915 = vpop.f32.mrf.mxu0
        %916 = vmatprep.mubr.bf16.mxu0 0
        %917 = vmatmul.mubr.bf16.gmra.mxu0 %v802
        %v918 = vpop.f32.mrf.mxu0
        %v919 = vadd.f32 0.0, %v918
        %v920 = vpop.f32.mrf.mxu0
        %v921 = vpop.f32.mrf.mxu0
        %v922 = vadd.f32 0.0, %v921
        %v923 = vpop.f32.mrf.mxu0
        %924 = vdwg.mxu0
        %v941 = vunpack.c.l.b16 %v314
        %v942 = vunpack.c.l.b16 %v315
        %v943 = vunpack.c.l.b16 %v316
        %v944 = vunpack.c.l.b16 %v317
        %v945 = vunpack.c.l.b16 %v318
        %v946 = vunpack.c.l.b16 %v319
        %v947 = vunpack.c.l.b16 %v320
        %v948 = vunpack.c.l.b16 %v321
        %v949 = vunpack.c.l.b16 %v322
        %v950 = vunpack.c.l.b16 %v323
        %v951 = vunpack.c.l.b16 %v324
        %v952 = vunpack.c.l.b16 %v325
        %v953 = vunpack.c.l.b16 %v326
        %v954 = vunpack.c.l.b16 %v327
        %v955 = vunpack.c.l.b16 %v328
        %v956 = vunpack.c.l.b16 %v329
        %v957 = vpack.c.b16 %v942, %v941
        %v958 = vpack.c.b16 %v944, %v943
        %v959 = vpack.c.b16 %v946, %v945
        %v960 = vpack.c.b16 %v948, %v947
        %v961 = vpack.c.b16 %v950, %v949
        %v962 = vpack.c.b16 %v952, %v951
        %v963 = vpack.c.b16 %v954, %v953
        %v964 = vpack.c.b16 %v956, %v955
        %v981 = vunpack.c.l.b16 %v378
        %v982 = vunpack.c.l.b16 %v379
        %v983 = vunpack.c.l.b16 %v380
        %v984 = vunpack.c.l.b16 %v381
        %v985 = vunpack.c.l.b16 %v382
        %v986 = vunpack.c.l.b16 %v383
        %v987 = vunpack.c.l.b16 %v384
        %v988 = vunpack.c.l.b16 %v385
        %v989 = vunpack.c.l.b16 %v386
        %v990 = vunpack.c.l.b16 %v387
        %v991 = vunpack.c.l.b16 %v388
        %v992 = vunpack.c.l.b16 %v389
        %v993 = vunpack.c.l.b16 %v390
        %v994 = vunpack.c.l.b16 %v391
        %v995 = vunpack.c.l.b16 %v392
        %v996 = vunpack.c.l.b16 %v393
        %v997 = vpack.c.b16 %v982, %v981
        %v998 = vpack.c.b16 %v984, %v983
        %v999 = vpack.c.b16 %v986, %v985
        %v1000 = vpack.c.b16 %v988, %v987
        %v1001 = vpack.c.b16 %v990, %v989
        %v1002 = vpack.c.b16 %v992, %v991
        %v1003 = vpack.c.b16 %v994, %v993
        %v1004 = vpack.c.b16 %v996, %v995
        %v1006 = vsel %vm554, %v957, 0
        %v1009 = vsel %vm554, %v958, 0
        %v1012 = vsel %vm554, %v959, 0
        %v1015 = vsel %vm554, %v960, 0
        %v1018 = vsel %vm554, %v961, 0
        %v1021 = vsel %vm554, %v962, 0
        %v1024 = vsel %vm554, %v963, 0
        %v1027 = vsel %vm554, %v964, 0
        %v1030 = vsel %vm554, %v997, 0
        %v1033 = vsel %vm554, %v998, 0
        %v1036 = vsel %vm554, %v999, 0
        %v1039 = vsel %vm554, %v1000, 0
        %v1042 = vsel %vm554, %v1001, 0
        %v1045 = vsel %vm554, %v1002, 0
        %v1048 = vsel %vm554, %v1003, 0
        %v1051 = vsel %vm554, %v1004, 0
        %1053 = vmatprep.subr.bf16.mxu0 0
        %1054 = vmatpush1.bf16.xpose.msra.mxu0 %v1051
        %1055 = vmatprep.subr.bf16.mxu0 0
        %1056 = vmatpush1.bf16.xpose.msra.mxu0 %v1048
        %1057 = vmatprep.subr.bf16.mxu0 0
        %1058 = vmatpush1.bf16.xpose.msra.mxu0 %v1045
        %1059 = vmatprep.subr.bf16.mxu0 0
        %1060 = vmatpush1.bf16.xpose.msra.mxu0 %v1042
        %1061 = vmatprep.subr.bf16.mxu0 0
        %1062 = vmatpush1.bf16.xpose.msra.mxu0 %v1039
        %1063 = vmatprep.subr.bf16.mxu0 0
        %1064 = vmatpush1.bf16.xpose.msra.mxu0 %v1036
        %1065 = vmatprep.subr.bf16.mxu0 0
        %1066 = vmatpush1.bf16.xpose.msra.mxu0 %v1033
        %1067 = vmatprep.subr.bf16.mxu0 0
        %1068 = vmatpush1.bf16.xpose.msra.mxu0 %v1030
        %1069 = vmatprep.subr.bf16.mxu0 0
        %1070 = vmatpush2.bf16.xpose.msra.mxu0 0
        %1071 = vmatprep.subr.bf16.mxu0 0
        %1072 = vmatpush2.bf16.xpose.msra.mxu0 0
        %1073 = vmatprep.subr.bf16.mxu0 0
        %1074 = vmatpush2.bf16.xpose.msra.mxu0 0
        %1075 = vmatprep.subr.bf16.mxu0 0
        %1076 = vmatpush2.bf16.xpose.msra.mxu0 0
        %1077 = vmatprep.subr.bf16.mxu0 0
        %1078 = vmatpush2.bf16.xpose.msra.mxu0 0
        %1079 = vmatprep.subr.bf16.mxu0 0
        %1080 = vmatpush2.bf16.xpose.msra.mxu0 0
        %1081 = vmatprep.subr.bf16.mxu0 0
        %1082 = vmatpush2.bf16.xpose.msra.mxu0 0
        %1083 = vmatprep.subr.bf16.mxu0 0
        %1084 = vmatpush2.bf16.xpose.msra.mxu0 0
        %1085 = vmatprep.mubr.bf16.mxu0 0
        %1086 = vmatmul.mubr.bf16.gmra.mxu0 %v1006
        %v1087 = vpop.f32.mrf.mxu0
        %v1088 = vadd.f32 0.0, %v1087
        %v1089 = vpop.f32.mrf.mxu0
        %v1090 = vpop.f32.mrf.mxu0
        %v1091 = vadd.f32 0.0, %v1090
        %v1092 = vpop.f32.mrf.mxu0
        %1093 = vmatprep.mubr.bf16.mxu0 0
        %1094 = vmatmul.mubr.bf16.gmra.mxu0 %v1009
        %v1095 = vpop.f32.mrf.mxu0
        %v1096 = vadd.f32 0.0, %v1095
        %v1097 = vpop.f32.mrf.mxu0
        %v1098 = vpop.f32.mrf.mxu0
        %v1099 = vadd.f32 0.0, %v1098
        %v1100 = vpop.f32.mrf.mxu0
        %1101 = vmatprep.mubr.bf16.mxu0 0
        %1102 = vmatmul.mubr.bf16.gmra.mxu0 %v1012
        %v1103 = vpop.f32.mrf.mxu0
        %v1104 = vadd.f32 0.0, %v1103
        %v1105 = vpop.f32.mrf.mxu0
        %v1106 = vpop.f32.mrf.mxu0
        %v1107 = vadd.f32 0.0, %v1106
        %v1108 = vpop.f32.mrf.mxu0
        %1109 = vmatprep.mubr.bf16.mxu0 0
        %1110 = vmatmul.mubr.bf16.gmra.mxu0 %v1015
        %v1111 = vpop.f32.mrf.mxu0
        %v1112 = vadd.f32 0.0, %v1111
        %v1113 = vpop.f32.mrf.mxu0
        %v1114 = vpop.f32.mrf.mxu0
        %v1115 = vadd.f32 0.0, %v1114
        %v1116 = vpop.f32.mrf.mxu0
        %1117 = vmatprep.mubr.bf16.mxu0 0
        %1118 = vmatmul.mubr.bf16.gmra.mxu0 %v1018
        %v1119 = vpop.f32.mrf.mxu0
        %v1120 = vadd.f32 0.0, %v1119
        %v1121 = vpop.f32.mrf.mxu0
        %v1122 = vpop.f32.mrf.mxu0
        %v1123 = vadd.f32 0.0, %v1122
        %v1124 = vpop.f32.mrf.mxu0
        %1125 = vmatprep.mubr.bf16.mxu0 0
        %1126 = vmatmul.mubr.bf16.gmra.mxu0 %v1021
        %v1127 = vpop.f32.mrf.mxu0
        %v1128 = vadd.f32 0.0, %v1127
        %v1129 = vpop.f32.mrf.mxu0
        %v1130 = vpop.f32.mrf.mxu0
        %v1131 = vadd.f32 0.0, %v1130
        %v1132 = vpop.f32.mrf.mxu0
        %1133 = vmatprep.mubr.bf16.mxu0 0
        %1134 = vmatmul.mubr.bf16.gmra.mxu0 %v1024
        %v1135 = vpop.f32.mrf.mxu0
        %v1136 = vadd.f32 0.0, %v1135
        %v1137 = vpop.f32.mrf.mxu0
        %v1138 = vpop.f32.mrf.mxu0
        %v1139 = vadd.f32 0.0, %v1138
        %v1140 = vpop.f32.mrf.mxu0
        %1141 = vmatprep.mubr.bf16.mxu0 0
        %1142 = vmatmul.mubr.bf16.gmra.mxu0 %v1027
        %v1143 = vpop.f32.mrf.mxu0
        %v1144 = vadd.f32 0.0, %v1143
        %v1145 = vpop.f32.mrf.mxu0
        %v1146 = vpop.f32.mrf.mxu0
        %v1147 = vadd.f32 0.0, %v1146
        %v1148 = vpop.f32.mrf.mxu0
        %1149 = vdwg.mxu0
        %v1166 = vunpack.c.l.b16 %v330
        %v1167 = vunpack.c.l.b16 %v331
        %v1168 = vunpack.c.l.b16 %v332
        %v1169 = vunpack.c.l.b16 %v333
        %v1170 = vunpack.c.l.b16 %v334
        %v1171 = vunpack.c.l.b16 %v335
        %v1172 = vunpack.c.l.b16 %v336
        %v1173 = vunpack.c.l.b16 %v337
        %v1174 = vunpack.c.l.b16 %v338
        %v1175 = vunpack.c.l.b16 %v339
        %v1176 = vunpack.c.l.b16 %v340
        %v1177 = vunpack.c.l.b16 %v341
        %v1178 = vunpack.c.l.b16 %v342
        %v1179 = vunpack.c.l.b16 %v343
        %v1180 = vunpack.c.l.b16 %v344
        %v1181 = vunpack.c.l.b16 %v345
        %v1182 = vpack.c.b16 %v1167, %v1166
        %v1183 = vpack.c.b16 %v1169, %v1168
        %v1184 = vpack.c.b16 %v1171, %v1170
        %v1185 = vpack.c.b16 %v1173, %v1172
        %v1186 = vpack.c.b16 %v1175, %v1174
        %v1187 = vpack.c.b16 %v1177, %v1176
        %v1188 = vpack.c.b16 %v1179, %v1178
        %v1189 = vpack.c.b16 %v1181, %v1180
        %v1206 = vunpack.c.l.b16 %v394
        %v1207 = vunpack.c.l.b16 %v395
        %v1208 = vunpack.c.l.b16 %v396
        %v1209 = vunpack.c.l.b16 %v397
        %v1210 = vunpack.c.l.b16 %v398
        %v1211 = vunpack.c.l.b16 %v399
        %v1212 = vunpack.c.l.b16 %v400
        %v1213 = vunpack.c.l.b16 %v401
        %v1214 = vunpack.c.l.b16 %v402
        %v1215 = vunpack.c.l.b16 %v403
        %v1216 = vunpack.c.l.b16 %v404
        %v1217 = vunpack.c.l.b16 %v405
        %v1218 = vunpack.c.l.b16 %v406
        %v1219 = vunpack.c.l.b16 %v407
        %v1220 = vunpack.c.l.b16 %v408
        %v1221 = vunpack.c.l.b16 %v409
        %v1222 = vpack.c.b16 %v1207, %v1206
        %v1223 = vpack.c.b16 %v1209, %v1208
        %v1224 = vpack.c.b16 %v1211, %v1210
        %v1225 = vpack.c.b16 %v1213, %v1212
        %v1226 = vpack.c.b16 %v1215, %v1214
        %v1227 = vpack.c.b16 %v1217, %v1216
        %v1228 = vpack.c.b16 %v1219, %v1218
        %v1229 = vpack.c.b16 %v1221, %v1220
        %v1231 = vsel %vm554, %v1182, 0
        %v1234 = vsel %vm554, %v1183, 0
        %v1237 = vsel %vm554, %v1184, 0
        %v1240 = vsel %vm554, %v1185, 0
        %v1243 = vsel %vm554, %v1186, 0
        %v1246 = vsel %vm554, %v1187, 0
        %v1249 = vsel %vm554, %v1188, 0
        %v1252 = vsel %vm554, %v1189, 0
        %v1255 = vsel %vm554, %v1222, 0
        %v1258 = vsel %vm554, %v1223, 0
        %v1261 = vsel %vm554, %v1224, 0
        %v1264 = vsel %vm554, %v1225, 0
        %v1267 = vsel %vm554, %v1226, 0
        %v1270 = vsel %vm554, %v1227, 0
        %v1273 = vsel %vm554, %v1228, 0
        %v1276 = vsel %vm554, %v1229, 0
        %1278 = vmatprep.subr.bf16.mxu0 0
        %1279 = vmatpush1.bf16.xpose.msra.mxu0 %v1276
        %1280 = vmatprep.subr.bf16.mxu0 0
        %1281 = vmatpush1.bf16.xpose.msra.mxu0 %v1273
        %1282 = vmatprep.subr.bf16.mxu0 0
        %1283 = vmatpush1.bf16.xpose.msra.mxu0 %v1270
        %1284 = vmatprep.subr.bf16.mxu0 0
        %1285 = vmatpush1.bf16.xpose.msra.mxu0 %v1267
        %1286 = vmatprep.subr.bf16.mxu0 0
        %1287 = vmatpush1.bf16.xpose.msra.mxu0 %v1264
        %1288 = vmatprep.subr.bf16.mxu0 0
        %1289 = vmatpush1.bf16.xpose.msra.mxu0 %v1261
        %1290 = vmatprep.subr.bf16.mxu0 0
        %1291 = vmatpush1.bf16.xpose.msra.mxu0 %v1258
        %1292 = vmatprep.subr.bf16.mxu0 0
        %1293 = vmatpush1.bf16.xpose.msra.mxu0 %v1255
        %1294 = vmatprep.subr.bf16.mxu0 0
        %1295 = vmatpush2.bf16.xpose.msra.mxu0 0
        %1296 = vmatprep.subr.bf16.mxu0 0
        %1297 = vmatpush2.bf16.xpose.msra.mxu0 0
        %1298 = vmatprep.subr.bf16.mxu0 0
        %1299 = vmatpush2.bf16.xpose.msra.mxu0 0
        %1300 = vmatprep.subr.bf16.mxu0 0
        %1301 = vmatpush2.bf16.xpose.msra.mxu0 0
        %1302 = vmatprep.subr.bf16.mxu0 0
        %1303 = vmatpush2.bf16.xpose.msra.mxu0 0
        %1304 = vmatprep.subr.bf16.mxu0 0
        %1305 = vmatpush2.bf16.xpose.msra.mxu0 0
        %1306 = vmatprep.subr.bf16.mxu0 0
        %1307 = vmatpush2.bf16.xpose.msra.mxu0 0
        %1308 = vmatprep.subr.bf16.mxu0 0
        %1309 = vmatpush2.bf16.xpose.msra.mxu0 0
        %1310 = vmatprep.mubr.bf16.mxu0 0
        %1311 = vmatmul.mubr.bf16.gmra.mxu0 %v1231
        %v1312 = vpop.f32.mrf.mxu0
        %v1313 = vadd.f32 0.0, %v1312
        %v1314 = vpop.f32.mrf.mxu0
        %v1315 = vpop.f32.mrf.mxu0
        %v1316 = vadd.f32 0.0, %v1315
        %v1317 = vpop.f32.mrf.mxu0
        %1318 = vmatprep.mubr.bf16.mxu0 0
        %1319 = vmatmul.mubr.bf16.gmra.mxu0 %v1234
        %v1320 = vpop.f32.mrf.mxu0
        %v1321 = vadd.f32 0.0, %v1320
        %v1322 = vpop.f32.mrf.mxu0
        %v1323 = vpop.f32.mrf.mxu0
        %v1324 = vadd.f32 0.0, %v1323
        %v1325 = vpop.f32.mrf.mxu0
        %1326 = vmatprep.mubr.bf16.mxu0 0
        %1327 = vmatmul.mubr.bf16.gmra.mxu0 %v1237
        %v1328 = vpop.f32.mrf.mxu0
        %v1329 = vadd.f32 0.0, %v1328
        %v1330 = vpop.f32.mrf.mxu0
        %v1331 = vpop.f32.mrf.mxu0
        %v1332 = vadd.f32 0.0, %v1331
        %v1333 = vpop.f32.mrf.mxu0
        %1334 = vmatprep.mubr.bf16.mxu0 0
        %1335 = vmatmul.mubr.bf16.gmra.mxu0 %v1240
        %v1336 = vpop.f32.mrf.mxu0
        %v1337 = vadd.f32 0.0, %v1336
        %v1338 = vpop.f32.mrf.mxu0
        %v1339 = vpop.f32.mrf.mxu0
        %v1340 = vadd.f32 0.0, %v1339
        %v1341 = vpop.f32.mrf.mxu0
        %1342 = vmatprep.mubr.bf16.mxu0 0
        %1343 = vmatmul.mubr.bf16.gmra.mxu0 %v1243
        %v1344 = vpop.f32.mrf.mxu0
        %v1345 = vadd.f32 0.0, %v1344
        %v1346 = vpop.f32.mrf.mxu0
        %v1347 = vpop.f32.mrf.mxu0
        %v1348 = vadd.f32 0.0, %v1347
        %v1349 = vpop.f32.mrf.mxu0
        %1350 = vmatprep.mubr.bf16.mxu0 0
        %1351 = vmatmul.mubr.bf16.gmra.mxu0 %v1246
        %v1352 = vpop.f32.mrf.mxu0
        %v1353 = vadd.f32 0.0, %v1352
        %v1354 = vpop.f32.mrf.mxu0
        %v1355 = vpop.f32.mrf.mxu0
        %v1356 = vadd.f32 0.0, %v1355
        %v1357 = vpop.f32.mrf.mxu0
        %1358 = vmatprep.mubr.bf16.mxu0 0
        %1359 = vmatmul.mubr.bf16.gmra.mxu0 %v1249
        %v1360 = vpop.f32.mrf.mxu0
        %v1361 = vadd.f32 0.0, %v1360
        %v1362 = vpop.f32.mrf.mxu0
        %v1363 = vpop.f32.mrf.mxu0
        %v1364 = vadd.f32 0.0, %v1363
        %v1365 = vpop.f32.mrf.mxu0
        %1366 = vmatprep.mubr.bf16.mxu0 0
        %1367 = vmatmul.mubr.bf16.gmra.mxu0 %v1252
        %v1368 = vpop.f32.mrf.mxu0
        %v1369 = vadd.f32 0.0, %v1368
        %v1370 = vpop.f32.mrf.mxu0
        %v1371 = vpop.f32.mrf.mxu0
        %v1372 = vadd.f32 0.0, %v1371
        %v1373 = vpop.f32.mrf.mxu0
        %1374 = vdwg.mxu0
        %v1375 = vmul.f32 %v638, 0.17677669
        %v1376 = vmul.f32 %v641, 0.17677669
        %v1377 = vmul.f32 %v646, 0.17677669
        %v1378 = vmul.f32 %v649, 0.17677669
        %v1379 = vmul.f32 %v654, 0.17677669
        %v1380 = vmul.f32 %v657, 0.17677669
        %v1381 = vmul.f32 %v662, 0.17677669
        %v1382 = vmul.f32 %v665, 0.17677669
        %v1383 = vmul.f32 %v670, 0.17677669
        %v1384 = vmul.f32 %v673, 0.17677669
        %v1385 = vmul.f32 %v678, 0.17677669
        %v1386 = vmul.f32 %v681, 0.17677669
        %v1387 = vmul.f32 %v686, 0.17677669
        %v1388 = vmul.f32 %v689, 0.17677669
        %v1389 = vmul.f32 %v694, 0.17677669
        %v1390 = vmul.f32 %v697, 0.17677669
        %v1391 = vmul.f32 %v863, 0.17677669
        %v1392 = vmul.f32 %v866, 0.17677669
        %v1393 = vmul.f32 %v871, 0.17677669
        %v1394 = vmul.f32 %v874, 0.17677669
        %v1395 = vmul.f32 %v879, 0.17677669
        %v1396 = vmul.f32 %v882, 0.17677669
        %v1397 = vmul.f32 %v887, 0.17677669
        %v1398 = vmul.f32 %v890, 0.17677669
        %v1399 = vmul.f32 %v895, 0.17677669
        %v1400 = vmul.f32 %v898, 0.17677669
        %v1401 = vmul.f32 %v903, 0.17677669
        %v1402 = vmul.f32 %v906, 0.17677669
        %v1403 = vmul.f32 %v911, 0.17677669
        %v1404 = vmul.f32 %v914, 0.17677669
        %v1405 = vmul.f32 %v919, 0.17677669
        %v1406 = vmul.f32 %v922, 0.17677669
        %v1407 = vmul.f32 %v1088, 0.17677669
        %v1408 = vmul.f32 %v1091, 0.17677669
        %v1409 = vmul.f32 %v1096, 0.17677669
        %v1410 = vmul.f32 %v1099, 0.17677669
        %v1411 = vmul.f32 %v1104, 0.17677669
        %v1412 = vmul.f32 %v1107, 0.17677669
        %v1413 = vmul.f32 %v1112, 0.17677669
        %v1414 = vmul.f32 %v1115, 0.17677669
        %v1415 = vmul.f32 %v1120, 0.17677669
        %v1416 = vmul.f32 %v1123, 0.17677669
        %v1417 = vmul.f32 %v1128, 0.17677669
        %v1418 = vmul.f32 %v1131, 0.17677669
        %v1419 = vmul.f32 %v1136, 0.17677669
        %v1420 = vmul.f32 %v1139, 0.17677669
        %v1421 = vmul.f32 %v1144, 0.17677669
        %v1422 = vmul.f32 %v1147, 0.17677669
        %v1423 = vmul.f32 %v1313, 0.17677669
        %v1424 = vmul.f32 %v1316, 0.17677669
        %v1425 = vmul.f32 %v1321, 0.17677669
        %v1426 = vmul.f32 %v1324, 0.17677669
        %v1427 = vmul.f32 %v1329, 0.17677669
        %v1428 = vmul.f32 %v1332, 0.17677669
        %v1429 = vmul.f32 %v1337, 0.17677669
        %v1430 = vmul.f32 %v1340, 0.17677669
        %v1431 = vmul.f32 %v1345, 0.17677669
        %v1432 = vmul.f32 %v1348, 0.17677669
        %v1433 = vmul.f32 %v1353, 0.17677669
        %v1434 = vmul.f32 %v1356, 0.17677669
        %v1435 = vmul.f32 %v1361, 0.17677669
        %v1436 = vmul.f32 %v1364, 0.17677669
        %v1437 = vmul.f32 %v1369, 0.17677669
        %v1438 = vmul.f32 %v1372, 0.17677669
        %1439 = vmax.xlane.f32.xlu0 %v1375
        %v1440 = vpop.xlane.xlu0 %1439
        %1441 = vmax.xlane.f32.xlu0 %v1376
        %v1442 = vpop.xlane.xlu0 %1441
        %1443 = vmax.xlane.f32.xlu0 %v1377
        %v1444 = vpop.xlane.xlu0 %1443
        %1445 = vmax.xlane.f32.xlu0 %v1378
        %v1446 = vpop.xlane.xlu0 %1445
        %1447 = vmax.xlane.f32.xlu0 %v1379
        %v1448 = vpop.xlane.xlu0 %1447
        %1449 = vmax.xlane.f32.xlu0 %v1380
        %v1450 = vpop.xlane.xlu0 %1449
        %1451 = vmax.xlane.f32.xlu0 %v1381
        %v1452 = vpop.xlane.xlu0 %1451
        %1453 = vmax.xlane.f32.xlu0 %v1382
        %v1454 = vpop.xlane.xlu0 %1453
        %1455 = vmax.xlane.f32.xlu0 %v1383
        %v1456 = vpop.xlane.xlu0 %1455
        %1457 = vmax.xlane.f32.xlu0 %v1384
        %v1458 = vpop.xlane.xlu0 %1457
        %1459 = vmax.xlane.f32.xlu0 %v1385
        %v1460 = vpop.xlane.xlu0 %1459
        %1461 = vmax.xlane.f32.xlu0 %v1386
        %v1462 = vpop.xlane.xlu0 %1461
        %1463 = vmax.xlane.f32.xlu0 %v1387
        %v1464 = vpop.xlane.xlu0 %1463
        %1465 = vmax.xlane.f32.xlu0 %v1388
        %v1466 = vpop.xlane.xlu0 %1465
        %1467 = vmax.xlane.f32.xlu0 %v1389
        %v1468 = vpop.xlane.xlu0 %1467
        %1469 = vmax.xlane.f32.xlu0 %v1390
        %v1470 = vpop.xlane.xlu0 %1469
        %1471 = vmax.xlane.f32.xlu0 %v1391
        %v1472 = vpop.xlane.xlu0 %1471
        %1473 = vmax.xlane.f32.xlu0 %v1392
        %v1474 = vpop.xlane.xlu0 %1473
        %1475 = vmax.xlane.f32.xlu0 %v1393
        %v1476 = vpop.xlane.xlu0 %1475
        %1477 = vmax.xlane.f32.xlu0 %v1394
        %v1478 = vpop.xlane.xlu0 %1477
        %1479 = vmax.xlane.f32.xlu0 %v1395
        %v1480 = vpop.xlane.xlu0 %1479
        %1481 = vmax.xlane.f32.xlu0 %v1396
        %v1482 = vpop.xlane.xlu0 %1481
        %1483 = vmax.xlane.f32.xlu0 %v1397
        %v1484 = vpop.xlane.xlu0 %1483
        %1485 = vmax.xlane.f32.xlu0 %v1398
        %v1486 = vpop.xlane.xlu0 %1485
        %1487 = vmax.xlane.f32.xlu0 %v1399
        %v1488 = vpop.xlane.xlu0 %1487
        %1489 = vmax.xlane.f32.xlu0 %v1400
        %v1490 = vpop.xlane.xlu0 %1489
        %1491 = vmax.xlane.f32.xlu0 %v1401
        %v1492 = vpop.xlane.xlu0 %1491
        %1493 = vmax.xlane.f32.xlu0 %v1402
        %v1494 = vpop.xlane.xlu0 %1493
        %1495 = vmax.xlane.f32.xlu0 %v1403
        %v1496 = vpop.xlane.xlu0 %1495
        %1497 = vmax.xlane.f32.xlu0 %v1404
        %v1498 = vpop.xlane.xlu0 %1497
        %1499 = vmax.xlane.f32.xlu0 %v1405
        %v1500 = vpop.xlane.xlu0 %1499
        %1501 = vmax.xlane.f32.xlu0 %v1406
        %v1502 = vpop.xlane.xlu0 %1501
        %1503 = vmax.xlane.f32.xlu0 %v1407
        %v1504 = vpop.xlane.xlu0 %1503
        %1505 = vmax.xlane.f32.xlu0 %v1408
        %v1506 = vpop.xlane.xlu0 %1505
        %1507 = vmax.xlane.f32.xlu0 %v1409
        %v1508 = vpop.xlane.xlu0 %1507
        %1509 = vmax.xlane.f32.xlu0 %v1410
        %v1510 = vpop.xlane.xlu0 %1509
        %1511 = vmax.xlane.f32.xlu0 %v1411
        %v1512 = vpop.xlane.xlu0 %1511
        %1513 = vmax.xlane.f32.xlu0 %v1412
        %v1514 = vpop.xlane.xlu0 %1513
        %1515 = vmax.xlane.f32.xlu0 %v1413
        %v1516 = vpop.xlane.xlu0 %1515
        %1517 = vmax.xlane.f32.xlu0 %v1414
        %v1518 = vpop.xlane.xlu0 %1517
        %1519 = vmax.xlane.f32.xlu0 %v1415
        %v1520 = vpop.xlane.xlu0 %1519
        %1521 = vmax.xlane.f32.xlu0 %v1416
        %v1522 = vpop.xlane.xlu0 %1521
        %1523 = vmax.xlane.f32.xlu0 %v1417
        %v1524 = vpop.xlane.xlu0 %1523
        %1525 = vmax.xlane.f32.xlu0 %v1418
        %v1526 = vpop.xlane.xlu0 %1525
        %1527 = vmax.xlane.f32.xlu0 %v1419
        %v1528 = vpop.xlane.xlu0 %1527
        %1529 = vmax.xlane.f32.xlu0 %v1420
        %v1530 = vpop.xlane.xlu0 %1529
        %1531 = vmax.xlane.f32.xlu0 %v1421
        %v1532 = vpop.xlane.xlu0 %1531
        %1533 = vmax.xlane.f32.xlu0 %v1422
        %v1534 = vpop.xlane.xlu0 %1533
        %1535 = vmax.xlane.f32.xlu0 %v1423
        %v1536 = vpop.xlane.xlu0 %1535
        %1537 = vmax.xlane.f32.xlu0 %v1424
        %v1538 = vpop.xlane.xlu0 %1537
        %1539 = vmax.xlane.f32.xlu0 %v1425
        %v1540 = vpop.xlane.xlu0 %1539
        %1541 = vmax.xlane.f32.xlu0 %v1426
        %v1542 = vpop.xlane.xlu0 %1541
        %1543 = vmax.xlane.f32.xlu0 %v1427
        %v1544 = vpop.xlane.xlu0 %1543
        %1545 = vmax.xlane.f32.xlu0 %v1428
        %v1546 = vpop.xlane.xlu0 %1545
        %1547 = vmax.xlane.f32.xlu0 %v1429
        %v1548 = vpop.xlane.xlu0 %1547
        %1549 = vmax.xlane.f32.xlu0 %v1430
        %v1550 = vpop.xlane.xlu0 %1549
        %1551 = vmax.xlane.f32.xlu0 %v1431
        %v1552 = vpop.xlane.xlu0 %1551
        %1553 = vmax.xlane.f32.xlu0 %v1432
        %v1554 = vpop.xlane.xlu0 %1553
        %1555 = vmax.xlane.f32.xlu0 %v1433
        %v1556 = vpop.xlane.xlu0 %1555
        %1557 = vmax.xlane.f32.xlu0 %v1434
        %v1558 = vpop.xlane.xlu0 %1557
        %1559 = vmax.xlane.f32.xlu0 %v1435
        %v1560 = vpop.xlane.xlu0 %1559
        %1561 = vmax.xlane.f32.xlu0 %v1436
        %v1562 = vpop.xlane.xlu0 %1561
        %1563 = vmax.xlane.f32.xlu0 %v1437
        %v1564 = vpop.xlane.xlu0 %1563
        %1565 = vmax.xlane.f32.xlu0 %v1438
        %v1566 = vpop.xlane.xlu0 %1565
        %v1567 = vsub.f32 %v1375, %v1440
        %v1568 = vsub.f32 %v1376, %v1442
        %v1569 = vsub.f32 %v1377, %v1444
        %v1570 = vsub.f32 %v1378, %v1446
        %v1571 = vsub.f32 %v1379, %v1448
        %v1572 = vsub.f32 %v1380, %v1450
        %v1573 = vsub.f32 %v1381, %v1452
        %v1574 = vsub.f32 %v1382, %v1454
        %v1575 = vsub.f32 %v1383, %v1456
        %v1576 = vsub.f32 %v1384, %v1458
        %v1577 = vsub.f32 %v1385, %v1460
        %v1578 = vsub.f32 %v1386, %v1462
        %v1579 = vsub.f32 %v1387, %v1464
        %v1580 = vsub.f32 %v1388, %v1466
        %v1581 = vsub.f32 %v1389, %v1468
        %v1582 = vsub.f32 %v1390, %v1470
        %v1583 = vsub.f32 %v1391, %v1472
        %v1584 = vsub.f32 %v1392, %v1474
        %v1585 = vsub.f32 %v1393, %v1476
        %v1586 = vsub.f32 %v1394, %v1478
        %v1587 = vsub.f32 %v1395, %v1480
        %v1588 = vsub.f32 %v1396, %v1482
        %v1589 = vsub.f32 %v1397, %v1484
        %v1590 = vsub.f32 %v1398, %v1486
        %v1591 = vsub.f32 %v1399, %v1488
        %v1592 = vsub.f32 %v1400, %v1490
        %v1593 = vsub.f32 %v1401, %v1492
        %v1594 = vsub.f32 %v1402, %v1494
        %v1595 = vsub.f32 %v1403, %v1496
        %v1596 = vsub.f32 %v1404, %v1498
        %v1597 = vsub.f32 %v1405, %v1500
        %v1598 = vsub.f32 %v1406, %v1502
        %v1599 = vsub.f32 %v1407, %v1504
        %v1600 = vsub.f32 %v1408, %v1506
        %v1601 = vsub.f32 %v1409, %v1508
        %v1602 = vsub.f32 %v1410, %v1510
        %v1603 = vsub.f32 %v1411, %v1512
        %v1604 = vsub.f32 %v1412, %v1514
        %v1605 = vsub.f32 %v1413, %v1516
        %v1606 = vsub.f32 %v1414, %v1518
        %v1607 = vsub.f32 %v1415, %v1520
        %v1608 = vsub.f32 %v1416, %v1522
        %v1609 = vsub.f32 %v1417, %v1524
        %v1610 = vsub.f32 %v1418, %v1526
        %v1611 = vsub.f32 %v1419, %v1528
        %v1612 = vsub.f32 %v1420, %v1530
        %v1613 = vsub.f32 %v1421, %v1532
        %v1614 = vsub.f32 %v1422, %v1534
        %v1615 = vsub.f32 %v1423, %v1536
        %v1616 = vsub.f32 %v1424, %v1538
        %v1617 = vsub.f32 %v1425, %v1540
        %v1618 = vsub.f32 %v1426, %v1542
        %v1619 = vsub.f32 %v1427, %v1544
        %v1620 = vsub.f32 %v1428, %v1546
        %v1621 = vsub.f32 %v1429, %v1548
        %v1622 = vsub.f32 %v1430, %v1550
        %v1623 = vsub.f32 %v1431, %v1552
        %v1624 = vsub.f32 %v1432, %v1554
        %v1625 = vsub.f32 %v1433, %v1556
        %v1626 = vsub.f32 %v1434, %v1558
        %v1627 = vsub.f32 %v1435, %v1560
        %v1628 = vsub.f32 %v1436, %v1562
        %v1629 = vsub.f32 %v1437, %v1564
        %v1630 = vsub.f32 %v1438, %v1566
        %v1631 = vmul.f32 %v1567, 1.442695
        %v1632 = vpow.pop %v1631
        %v1633 = vmul.f32 %v1568, 1.442695
        %v1634 = vpow.pop %v1633
        %v1635 = vmul.f32 %v1569, 1.442695
        %v1636 = vpow.pop %v1635
        %v1637 = vmul.f32 %v1570, 1.442695
        %v1638 = vpow.pop %v1637
        %v1639 = vmul.f32 %v1571, 1.442695
        %v1640 = vpow.pop %v1639
        %v1641 = vmul.f32 %v1572, 1.442695
        %v1642 = vpow.pop %v1641
        %v1643 = vmul.f32 %v1573, 1.442695
        %v1644 = vpow.pop %v1643
        %v1645 = vmul.f32 %v1574, 1.442695
        %v1646 = vpow.pop %v1645
        %v1647 = vmul.f32 %v1575, 1.442695
        %v1648 = vpow.pop %v1647
        %v1649 = vmul.f32 %v1576, 1.442695
        %v1650 = vpow.pop %v1649
        %v1651 = vmul.f32 %v1577, 1.442695
        %v1652 = vpow.pop %v1651
        %v1653 = vmul.f32 %v1578, 1.442695
        %v1654 = vpow.pop %v1653
        %v1655 = vmul.f32 %v1579, 1.442695
        %v1656 = vpow.pop %v1655
        %v1657 = vmul.f32 %v1580, 1.442695
        %v1658 = vpow.pop %v1657
        %v1659 = vmul.f32 %v1581, 1.442695
        %v1660 = vpow.pop %v1659
        %v1661 = vmul.f32 %v1582, 1.442695
        %v1662 = vpow.pop %v1661
        %v1663 = vmul.f32 %v1583, 1.442695
        %v1664 = vpow.pop %v1663
        %v1665 = vmul.f32 %v1584, 1.442695
        %v1666 = vpow.pop %v1665
        %v1667 = vmul.f32 %v1585, 1.442695
        %v1668 = vpow.pop %v1667
        %v1669 = vmul.f32 %v1586, 1.442695
        %v1670 = vpow.pop %v1669
        %v1671 = vmul.f32 %v1587, 1.442695
        %v1672 = vpow.pop %v1671
        %v1673 = vmul.f32 %v1588, 1.442695
        %v1674 = vpow.pop %v1673
        %v1675 = vmul.f32 %v1589, 1.442695
        %v1676 = vpow.pop %v1675
        %v1677 = vmul.f32 %v1590, 1.442695
        %v1678 = vpow.pop %v1677
        %v1679 = vmul.f32 %v1591, 1.442695
        %v1680 = vpow.pop %v1679
        %v1681 = vmul.f32 %v1592, 1.442695
        %v1682 = vpow.pop %v1681
        %v1683 = vmul.f32 %v1593, 1.442695
        %v1684 = vpow.pop %v1683
        %v1685 = vmul.f32 %v1594, 1.442695
        %v1686 = vpow.pop %v1685
        %v1687 = vmul.f32 %v1595, 1.442695
        %v1688 = vpow.pop %v1687
        %v1689 = vmul.f32 %v1596, 1.442695
        %v1690 = vpow.pop %v1689
        %v1691 = vmul.f32 %v1597, 1.442695
        %v1692 = vpow.pop %v1691
        %v1693 = vmul.f32 %v1598, 1.442695
        %v1694 = vpow.pop %v1693
        %v1695 = vmul.f32 %v1599, 1.442695
        %v1696 = vpow.pop %v1695
        %v1697 = vmul.f32 %v1600, 1.442695
        %v1698 = vpow.pop %v1697
        %v1699 = vmul.f32 %v1601, 1.442695
        %v1700 = vpow.pop %v1699
        %v1701 = vmul.f32 %v1602, 1.442695
        %v1702 = vpow.pop %v1701
        %v1703 = vmul.f32 %v1603, 1.442695
        %v1704 = vpow.pop %v1703
        %v1705 = vmul.f32 %v1604, 1.442695
        %v1706 = vpow.pop %v1705
        %v1707 = vmul.f32 %v1605, 1.442695
        %v1708 = vpow.pop %v1707
        %v1709 = vmul.f32 %v1606, 1.442695
        %v1710 = vpow.pop %v1709
        %v1711 = vmul.f32 %v1607, 1.442695
        %v1712 = vpow.pop %v1711
        %v1713 = vmul.f32 %v1608, 1.442695
        %v1714 = vpow.pop %v1713
        %v1715 = vmul.f32 %v1609, 1.442695
        %v1716 = vpow.pop %v1715
        %v1717 = vmul.f32 %v1610, 1.442695
        %v1718 = vpow.pop %v1717
        %v1719 = vmul.f32 %v1611, 1.442695
        %v1720 = vpow.pop %v1719
        %v1721 = vmul.f32 %v1612, 1.442695
        %v1722 = vpow.pop %v1721
        %v1723 = vmul.f32 %v1613, 1.442695
        %v1724 = vpow.pop %v1723
        %v1725 = vmul.f32 %v1614, 1.442695
        %v1726 = vpow.pop %v1725
        %v1727 = vmul.f32 %v1615, 1.442695
        %v1728 = vpow.pop %v1727
        %v1729 = vmul.f32 %v1616, 1.442695
        %v1730 = vpow.pop %v1729
        %v1731 = vmul.f32 %v1617, 1.442695
        %v1732 = vpow.pop %v1731
        %v1733 = vmul.f32 %v1618, 1.442695
        %v1734 = vpow.pop %v1733
        %v1735 = vmul.f32 %v1619, 1.442695
        %v1736 = vpow.pop %v1735
        %v1737 = vmul.f32 %v1620, 1.442695
        %v1738 = vpow.pop %v1737
        %v1739 = vmul.f32 %v1621, 1.442695
        %v1740 = vpow.pop %v1739
        %v1741 = vmul.f32 %v1622, 1.442695
        %v1742 = vpow.pop %v1741
        %v1743 = vmul.f32 %v1623, 1.442695
        %v1744 = vpow.pop %v1743
        %v1745 = vmul.f32 %v1624, 1.442695
        %v1746 = vpow.pop %v1745
        %v1747 = vmul.f32 %v1625, 1.442695
        %v1748 = vpow.pop %v1747
        %v1749 = vmul.f32 %v1626, 1.442695
        %v1750 = vpow.pop %v1749
        %v1751 = vmul.f32 %v1627, 1.442695
        %v1752 = vpow.pop %v1751
        %v1753 = vmul.f32 %v1628, 1.442695
        %v1754 = vpow.pop %v1753
        %v1755 = vmul.f32 %v1629, 1.442695
        %v1756 = vpow.pop %v1755
        %v1757 = vmul.f32 %v1630, 1.442695
        %v1758 = vpow.pop %v1757
        %1759 = vadd.xlane.f32.xlu0 %v1632
        %v1760 = vpop.xlane.xlu0 %1759
        %1761 = vadd.xlane.f32.xlu0 %v1634
        %v1762 = vpop.xlane.xlu0 %1761
        %1763 = vadd.xlane.f32.xlu0 %v1636
        %v1764 = vpop.xlane.xlu0 %1763
        %1765 = vadd.xlane.f32.xlu0 %v1638
        %v1766 = vpop.xlane.xlu0 %1765
        %1767 = vadd.xlane.f32.xlu0 %v1640
        %v1768 = vpop.xlane.xlu0 %1767
        %1769 = vadd.xlane.f32.xlu0 %v1642
        %v1770 = vpop.xlane.xlu0 %1769
        %1771 = vadd.xlane.f32.xlu0 %v1644
        %v1772 = vpop.xlane.xlu0 %1771
        %1773 = vadd.xlane.f32.xlu0 %v1646
        %v1774 = vpop.xlane.xlu0 %1773
        %1775 = vadd.xlane.f32.xlu0 %v1648
        %v1776 = vpop.xlane.xlu0 %1775
        %1777 = vadd.xlane.f32.xlu0 %v1650
        %v1778 = vpop.xlane.xlu0 %1777
        %1779 = vadd.xlane.f32.xlu0 %v1652
        %v1780 = vpop.xlane.xlu0 %1779
        %1781 = vadd.xlane.f32.xlu0 %v1654
        %v1782 = vpop.xlane.xlu0 %1781
        %1783 = vadd.xlane.f32.xlu0 %v1656
        %v1784 = vpop.xlane.xlu0 %1783
        %1785 = vadd.xlane.f32.xlu0 %v1658
        %v1786 = vpop.xlane.xlu0 %1785
        %1787 = vadd.xlane.f32.xlu0 %v1660
        %v1788 = vpop.xlane.xlu0 %1787
        %1789 = vadd.xlane.f32.xlu0 %v1662
        %v1790 = vpop.xlane.xlu0 %1789
        %1791 = vadd.xlane.f32.xlu0 %v1664
        %v1792 = vpop.xlane.xlu0 %1791
        %1793 = vadd.xlane.f32.xlu0 %v1666
        %v1794 = vpop.xlane.xlu0 %1793
        %1795 = vadd.xlane.f32.xlu0 %v1668
        %v1796 = vpop.xlane.xlu0 %1795
        %1797 = vadd.xlane.f32.xlu0 %v1670
        %v1798 = vpop.xlane.xlu0 %1797
        %1799 = vadd.xlane.f32.xlu0 %v1672
        %v1800 = vpop.xlane.xlu0 %1799
        %1801 = vadd.xlane.f32.xlu0 %v1674
        %v1802 = vpop.xlane.xlu0 %1801
        %1803 = vadd.xlane.f32.xlu0 %v1676
        %v1804 = vpop.xlane.xlu0 %1803
        %1805 = vadd.xlane.f32.xlu0 %v1678
        %v1806 = vpop.xlane.xlu0 %1805
        %1807 = vadd.xlane.f32.xlu0 %v1680
        %v1808 = vpop.xlane.xlu0 %1807
        %1809 = vadd.xlane.f32.xlu0 %v1682
        %v1810 = vpop.xlane.xlu0 %1809
        %1811 = vadd.xlane.f32.xlu0 %v1684
        %v1812 = vpop.xlane.xlu0 %1811
        %1813 = vadd.xlane.f32.xlu0 %v1686
        %v1814 = vpop.xlane.xlu0 %1813
        %1815 = vadd.xlane.f32.xlu0 %v1688
        %v1816 = vpop.xlane.xlu0 %1815
        %1817 = vadd.xlane.f32.xlu0 %v1690
        %v1818 = vpop.xlane.xlu0 %1817
        %1819 = vadd.xlane.f32.xlu0 %v1692
        %v1820 = vpop.xlane.xlu0 %1819
        %1821 = vadd.xlane.f32.xlu0 %v1694
        %v1822 = vpop.xlane.xlu0 %1821
        %1823 = vadd.xlane.f32.xlu0 %v1696
        %v1824 = vpop.xlane.xlu0 %1823
        %1825 = vadd.xlane.f32.xlu0 %v1698
        %v1826 = vpop.xlane.xlu0 %1825
        %1827 = vadd.xlane.f32.xlu0 %v1700
        %v1828 = vpop.xlane.xlu0 %1827
        %1829 = vadd.xlane.f32.xlu0 %v1702
        %v1830 = vpop.xlane.xlu0 %1829
        %1831 = vadd.xlane.f32.xlu0 %v1704
        %v1832 = vpop.xlane.xlu0 %1831
        %1833 = vadd.xlane.f32.xlu0 %v1706
        %v1834 = vpop.xlane.xlu0 %1833
        %1835 = vadd.xlane.f32.xlu0 %v1708
        %v1836 = vpop.xlane.xlu0 %1835
        %1837 = vadd.xlane.f32.xlu0 %v1710
        %v1838 = vpop.xlane.xlu0 %1837
        %1839 = vadd.xlane.f32.xlu0 %v1712
        %v1840 = vpop.xlane.xlu0 %1839
        %1841 = vadd.xlane.f32.xlu0 %v1714
        %v1842 = vpop.xlane.xlu0 %1841
        %1843 = vadd.xlane.f32.xlu0 %v1716
        %v1844 = vpop.xlane.xlu0 %1843
        %1845 = vadd.xlane.f32.xlu0 %v1718
        %v1846 = vpop.xlane.xlu0 %1845
        %1847 = vadd.xlane.f32.xlu0 %v1720
        %v1848 = vpop.xlane.xlu0 %1847
        %1849 = vadd.xlane.f32.xlu0 %v1722
        %v1850 = vpop.xlane.xlu0 %1849
        %1851 = vadd.xlane.f32.xlu0 %v1724
        %v1852 = vpop.xlane.xlu0 %1851
        %1853 = vadd.xlane.f32.xlu0 %v1726
        %v1854 = vpop.xlane.xlu0 %1853
        %1855 = vadd.xlane.f32.xlu0 %v1728
        %v1856 = vpop.xlane.xlu0 %1855
        %1857 = vadd.xlane.f32.xlu0 %v1730
        %v1858 = vpop.xlane.xlu0 %1857
        %1859 = vadd.xlane.f32.xlu0 %v1732
        %v1860 = vpop.xlane.xlu0 %1859
        %1861 = vadd.xlane.f32.xlu0 %v1734
        %v1862 = vpop.xlane.xlu0 %1861
        %1863 = vadd.xlane.f32.xlu0 %v1736
        %v1864 = vpop.xlane.xlu0 %1863
        %1865 = vadd.xlane.f32.xlu0 %v1738
        %v1866 = vpop.xlane.xlu0 %1865
        %1867 = vadd.xlane.f32.xlu0 %v1740
        %v1868 = vpop.xlane.xlu0 %1867
        %1869 = vadd.xlane.f32.xlu0 %v1742
        %v1870 = vpop.xlane.xlu0 %1869
        %1871 = vadd.xlane.f32.xlu0 %v1744
        %v1872 = vpop.xlane.xlu0 %1871
        %1873 = vadd.xlane.f32.xlu0 %v1746
        %v1874 = vpop.xlane.xlu0 %1873
        %1875 = vadd.xlane.f32.xlu0 %v1748
        %v1876 = vpop.xlane.xlu0 %1875
        %1877 = vadd.xlane.f32.xlu0 %v1750
        %v1878 = vpop.xlane.xlu0 %1877
        %1879 = vadd.xlane.f32.xlu0 %v1752
        %v1880 = vpop.xlane.xlu0 %1879
        %1881 = vadd.xlane.f32.xlu0 %v1754
        %v1882 = vpop.xlane.xlu0 %1881
        %1883 = vadd.xlane.f32.xlu0 %v1756
        %v1884 = vpop.xlane.xlu0 %1883
        %1885 = vadd.xlane.f32.xlu0 %v1758
        %v1886 = vpop.xlane.xlu0 %1885
        %v1887 = vrcp.pop %v1760
        %v1888 = vrcp.pop %v1762
        %v1889 = vrcp.pop %v1764
        %v1890 = vrcp.pop %v1766
        %v1891 = vrcp.pop %v1768
        %v1892 = vrcp.pop %v1770
        %v1893 = vrcp.pop %v1772
        %v1894 = vrcp.pop %v1774
        %v1895 = vrcp.pop %v1776
        %v1896 = vrcp.pop %v1778
        %v1897 = vrcp.pop %v1780
        %v1898 = vrcp.pop %v1782
        %v1899 = vrcp.pop %v1784
        %v1900 = vrcp.pop %v1786
        %v1901 = vrcp.pop %v1788
        %v1902 = vrcp.pop %v1790
        %v1903 = vrcp.pop %v1792
        %v1904 = vrcp.pop %v1794
        %v1905 = vrcp.pop %v1796
        %v1906 = vrcp.pop %v1798
        %v1907 = vrcp.pop %v1800
        %v1908 = vrcp.pop %v1802
        %v1909 = vrcp.pop %v1804
        %v1910 = vrcp.pop %v1806
        %v1911 = vrcp.pop %v1808
        %v1912 = vrcp.pop %v1810
        %v1913 = vrcp.pop %v1812
        %v1914 = vrcp.pop %v1814
        %v1915 = vrcp.pop %v1816
        %v1916 = vrcp.pop %v1818
        %v1917 = vrcp.pop %v1820
        %v1918 = vrcp.pop %v1822
        %v1919 = vrcp.pop %v1824
        %v1920 = vrcp.pop %v1826
        %v1921 = vrcp.pop %v1828
        %v1922 = vrcp.pop %v1830
        %v1923 = vrcp.pop %v1832
        %v1924 = vrcp.pop %v1834
        %v1925 = vrcp.pop %v1836
        %v1926 = vrcp.pop %v1838
        %v1927 = vrcp.pop %v1840
        %v1928 = vrcp.pop %v1842
        %v1929 = vrcp.pop %v1844
        %v1930 = vrcp.pop %v1846
        %v1931 = vrcp.pop %v1848
        %v1932 = vrcp.pop %v1850
        %v1933 = vrcp.pop %v1852
        %v1934 = vrcp.pop %v1854
        %v1935 = vrcp.pop %v1856
        %v1936 = vrcp.pop %v1858
        %v1937 = vrcp.pop %v1860
        %v1938 = vrcp.pop %v1862
        %v1939 = vrcp.pop %v1864
        %v1940 = vrcp.pop %v1866
        %v1941 = vrcp.pop %v1868
        %v1942 = vrcp.pop %v1870
        %v1943 = vrcp.pop %v1872
        %v1944 = vrcp.pop %v1874
        %v1945 = vrcp.pop %v1876
        %v1946 = vrcp.pop %v1878
        %v1947 = vrcp.pop %v1880
        %v1948 = vrcp.pop %v1882
        %v1949 = vrcp.pop %v1884
        %v1950 = vrcp.pop %v1886
        %v1951 = vmul.f32 %v1632, %v1887
        %v1952 = vmul.f32 %v1634, %v1888
        %v1953 = vmul.f32 %v1636, %v1889
        %v1954 = vmul.f32 %v1638, %v1890
        %v1955 = vmul.f32 %v1640, %v1891
        %v1956 = vmul.f32 %v1642, %v1892
        %v1957 = vmul.f32 %v1644, %v1893
        %v1958 = vmul.f32 %v1646, %v1894
        %v1959 = vmul.f32 %v1648, %v1895
        %v1960 = vmul.f32 %v1650, %v1896
        %v1961 = vmul.f32 %v1652, %v1897
        %v1962 = vmul.f32 %v1654, %v1898
        %v1963 = vmul.f32 %v1656, %v1899
        %v1964 = vmul.f32 %v1658, %v1900
        %v1965 = vmul.f32 %v1660, %v1901
        %v1966 = vmul.f32 %v1662, %v1902
        %v1967 = vmul.f32 %v1664, %v1903
        %v1968 = vmul.f32 %v1666, %v1904
        %v1969 = vmul.f32 %v1668, %v1905
        %v1970 = vmul.f32 %v1670, %v1906
        %v1971 = vmul.f32 %v1672, %v1907
        %v1972 = vmul.f32 %v1674, %v1908
        %v1973 = vmul.f32 %v1676, %v1909
        %v1974 = vmul.f32 %v1678, %v1910
        %v1975 = vmul.f32 %v1680, %v1911
        %v1976 = vmul.f32 %v1682, %v1912
        %v1977 = vmul.f32 %v1684, %v1913
        %v1978 = vmul.f32 %v1686, %v1914
        %v1979 = vmul.f32 %v1688, %v1915
        %v1980 = vmul.f32 %v1690, %v1916
        %v1981 = vmul.f32 %v1692, %v1917
        %v1982 = vmul.f32 %v1694, %v1918
        %v1983 = vmul.f32 %v1696, %v1919
        %v1984 = vmul.f32 %v1698, %v1920
        %v1985 = vmul.f32 %v1700, %v1921
        %v1986 = vmul.f32 %v1702, %v1922
        %v1987 = vmul.f32 %v1704, %v1923
        %v1988 = vmul.f32 %v1706, %v1924
        %v1989 = vmul.f32 %v1708, %v1925
        %v1990 = vmul.f32 %v1710, %v1926
        %v1991 = vmul.f32 %v1712, %v1927
        %v1992 = vmul.f32 %v1714, %v1928
        %v1993 = vmul.f32 %v1716, %v1929
        %v1994 = vmul.f32 %v1718, %v1930
        %v1995 = vmul.f32 %v1720, %v1931
        %v1996 = vmul.f32 %v1722, %v1932
        %v1997 = vmul.f32 %v1724, %v1933
        %v1998 = vmul.f32 %v1726, %v1934
        %v1999 = vmul.f32 %v1728, %v1935
        %v2000 = vmul.f32 %v1730, %v1936
        %v2001 = vmul.f32 %v1732, %v1937
        %v2002 = vmul.f32 %v1734, %v1938
        %v2003 = vmul.f32 %v1736, %v1939
        %v2004 = vmul.f32 %v1738, %v1940
        %v2005 = vmul.f32 %v1740, %v1941
        %v2006 = vmul.f32 %v1742, %v1942
        %v2007 = vmul.f32 %v1744, %v1943
        %v2008 = vmul.f32 %v1746, %v1944
        %v2009 = vmul.f32 %v1748, %v1945
        %v2010 = vmul.f32 %v1750, %v1946
        %v2011 = vmul.f32 %v1752, %v1947
        %v2012 = vmul.f32 %v1754, %v1948
        %v2013 = vmul.f32 %v1756, %v1949
        %v2014 = vmul.f32 %v1758, %v1950
        %v2015 = vpack.c.bf16 %v1952, %v1951
        %v2016 = vpack.c.bf16 %v1954, %v1953
        %v2017 = vpack.c.bf16 %v1956, %v1955
        %v2018 = vpack.c.bf16 %v1958, %v1957
        %v2019 = vpack.c.bf16 %v1960, %v1959
        %v2020 = vpack.c.bf16 %v1962, %v1961
        %v2021 = vpack.c.bf16 %v1964, %v1963
        %v2022 = vpack.c.bf16 %v1966, %v1965
        %v2023 = vpack.c.bf16 %v1968, %v1967
        %v2024 = vpack.c.bf16 %v1970, %v1969
        %v2025 = vpack.c.bf16 %v1972, %v1971
        %v2026 = vpack.c.bf16 %v1974, %v1973
        %v2027 = vpack.c.bf16 %v1976, %v1975
        %v2028 = vpack.c.bf16 %v1978, %v1977
        %v2029 = vpack.c.bf16 %v1980, %v1979
        %v2030 = vpack.c.bf16 %v1982, %v1981
        %v2031 = vpack.c.bf16 %v1984, %v1983
        %v2032 = vpack.c.bf16 %v1986, %v1985
        %v2033 = vpack.c.bf16 %v1988, %v1987
        %v2034 = vpack.c.bf16 %v1990, %v1989
        %v2035 = vpack.c.bf16 %v1992, %v1991
        %v2036 = vpack.c.bf16 %v1994, %v1993
        %v2037 = vpack.c.bf16 %v1996, %v1995
        %v2038 = vpack.c.bf16 %v1998, %v1997
        %v2039 = vpack.c.bf16 %v2000, %v1999
        %v2040 = vpack.c.bf16 %v2002, %v2001
        %v2041 = vpack.c.bf16 %v2004, %v2003
        %v2042 = vpack.c.bf16 %v2006, %v2005
        %v2043 = vpack.c.bf16 %v2008, %v2007
        %v2044 = vpack.c.bf16 %v2010, %v2009
        %v2045 = vpack.c.bf16 %v2012, %v2011
        %v2046 = vpack.c.bf16 %v2014, %v2013
        %v2079 = vunpack.c.l.b16 %v2015
        %v2080 = vunpack.c.h.b16 %v2015
        %v2081 = vunpack.c.l.b16 %v2016
        %v2082 = vunpack.c.h.b16 %v2016
        %v2083 = vunpack.c.l.b16 %v2017
        %v2084 = vunpack.c.h.b16 %v2017
        %v2085 = vunpack.c.l.b16 %v2018
        %v2086 = vunpack.c.h.b16 %v2018
        %v2087 = vunpack.c.l.b16 %v2019
        %v2088 = vunpack.c.h.b16 %v2019
        %v2089 = vunpack.c.l.b16 %v2020
        %v2090 = vunpack.c.h.b16 %v2020
        %v2091 = vunpack.c.l.b16 %v2021
        %v2092 = vunpack.c.h.b16 %v2021
        %v2093 = vunpack.c.l.b16 %v2022
        %v2094 = vunpack.c.h.b16 %v2022
        %v2095 = vunpack.c.l.b16 %v2023
        %v2096 = vunpack.c.h.b16 %v2023
        %v2097 = vunpack.c.l.b16 %v2024
        %v2098 = vunpack.c.h.b16 %v2024
        %v2099 = vunpack.c.l.b16 %v2025
        %v2100 = vunpack.c.h.b16 %v2025
        %v2101 = vunpack.c.l.b16 %v2026
        %v2102 = vunpack.c.h.b16 %v2026
        %v2103 = vunpack.c.l.b16 %v2027
        %v2104 = vunpack.c.h.b16 %v2027
        %v2105 = vunpack.c.l.b16 %v2028
        %v2106 = vunpack.c.h.b16 %v2028
        %v2107 = vunpack.c.l.b16 %v2029
        %v2108 = vunpack.c.h.b16 %v2029
        %v2109 = vunpack.c.l.b16 %v2030
        %v2110 = vunpack.c.h.b16 %v2030
        %v2111 = vunpack.c.l.b16 %v2031
        %v2112 = vunpack.c.h.b16 %v2031
        %v2113 = vunpack.c.l.b16 %v2032
        %v2114 = vunpack.c.h.b16 %v2032
        %v2115 = vunpack.c.l.b16 %v2033
        %v2116 = vunpack.c.h.b16 %v2033
        %v2117 = vunpack.c.l.b16 %v2034
        %v2118 = vunpack.c.h.b16 %v2034
        %v2119 = vunpack.c.l.b16 %v2035
        %v2120 = vunpack.c.h.b16 %v2035
        %v2121 = vunpack.c.l.b16 %v2036
        %v2122 = vunpack.c.h.b16 %v2036
        %v2123 = vunpack.c.l.b16 %v2037
        %v2124 = vunpack.c.h.b16 %v2037
        %v2125 = vunpack.c.l.b16 %v2038
        %v2126 = vunpack.c.h.b16 %v2038
        %v2127 = vunpack.c.l.b16 %v2039
        %v2128 = vunpack.c.h.b16 %v2039
        %v2129 = vunpack.c.l.b16 %v2040
        %v2130 = vunpack.c.h.b16 %v2040
        %v2131 = vunpack.c.l.b16 %v2041
        %v2132 = vunpack.c.h.b16 %v2041
        %v2133 = vunpack.c.l.b16 %v2042
        %v2134 = vunpack.c.h.b16 %v2042
        %v2135 = vunpack.c.l.b16 %v2043
        %v2136 = vunpack.c.h.b16 %v2043
        %v2137 = vunpack.c.l.b16 %v2044
        %v2138 = vunpack.c.h.b16 %v2044
        %v2139 = vunpack.c.l.b16 %v2045
        %v2140 = vunpack.c.h.b16 %v2045
        %v2141 = vunpack.c.l.b16 %v2046
        %v2142 = vunpack.c.h.b16 %v2046
        %v2143 = vpack.c.b16 %v2079, %v2079
        %v2144 = vpack.c.b16 %v2080, %v2080
        %v2145 = vpack.c.b16 %v2081, %v2081
        %v2146 = vpack.c.b16 %v2082, %v2082
        %v2147 = vpack.c.b16 %v2083, %v2083
        %v2148 = vpack.c.b16 %v2084, %v2084
        %v2149 = vpack.c.b16 %v2085, %v2085
        %v2150 = vpack.c.b16 %v2086, %v2086
        %v2151 = vpack.c.b16 %v2087, %v2087
        %v2152 = vpack.c.b16 %v2088, %v2088
        %v2153 = vpack.c.b16 %v2089, %v2089
        %v2154 = vpack.c.b16 %v2090, %v2090
        %v2155 = vpack.c.b16 %v2091, %v2091
        %v2156 = vpack.c.b16 %v2092, %v2092
        %v2157 = vpack.c.b16 %v2093, %v2093
        %v2158 = vpack.c.b16 %v2094, %v2094
        %v2159 = vpack.c.b16 %v2095, %v2095
        %v2160 = vpack.c.b16 %v2096, %v2096
        %v2161 = vpack.c.b16 %v2097, %v2097
        %v2162 = vpack.c.b16 %v2098, %v2098
        %v2163 = vpack.c.b16 %v2099, %v2099
        %v2164 = vpack.c.b16 %v2100, %v2100
        %v2165 = vpack.c.b16 %v2101, %v2101
        %v2166 = vpack.c.b16 %v2102, %v2102
        %v2167 = vpack.c.b16 %v2103, %v2103
        %v2168 = vpack.c.b16 %v2104, %v2104
        %v2169 = vpack.c.b16 %v2105, %v2105
        %v2170 = vpack.c.b16 %v2106, %v2106
        %v2171 = vpack.c.b16 %v2107, %v2107
        %v2172 = vpack.c.b16 %v2108, %v2108
        %v2173 = vpack.c.b16 %v2109, %v2109
        %v2174 = vpack.c.b16 %v2110, %v2110
        %v2175 = vpack.c.b16 %v2111, %v2111
        %v2176 = vpack.c.b16 %v2112, %v2112
        %v2177 = vpack.c.b16 %v2113, %v2113
        %v2178 = vpack.c.b16 %v2114, %v2114
        %v2179 = vpack.c.b16 %v2115, %v2115
        %v2180 = vpack.c.b16 %v2116, %v2116
        %v2181 = vpack.c.b16 %v2117, %v2117
        %v2182 = vpack.c.b16 %v2118, %v2118
        %v2183 = vpack.c.b16 %v2119, %v2119
        %v2184 = vpack.c.b16 %v2120, %v2120
        %v2185 = vpack.c.b16 %v2121, %v2121
        %v2186 = vpack.c.b16 %v2122, %v2122
        %v2187 = vpack.c.b16 %v2123, %v2123
        %v2188 = vpack.c.b16 %v2124, %v2124
        %v2189 = vpack.c.b16 %v2125, %v2125
        %v2190 = vpack.c.b16 %v2126, %v2126
        %v2191 = vpack.c.b16 %v2127, %v2127
        %v2192 = vpack.c.b16 %v2128, %v2128
        %v2193 = vpack.c.b16 %v2129, %v2129
        %v2194 = vpack.c.b16 %v2130, %v2130
        %v2195 = vpack.c.b16 %v2131, %v2131
        %v2196 = vpack.c.b16 %v2132, %v2132
        %v2197 = vpack.c.b16 %v2133, %v2133
        %v2198 = vpack.c.b16 %v2134, %v2134
        %v2199 = vpack.c.b16 %v2135, %v2135
        %v2200 = vpack.c.b16 %v2136, %v2136
        %v2201 = vpack.c.b16 %v2137, %v2137
        %v2202 = vpack.c.b16 %v2138, %v2138
        %v2203 = vpack.c.b16 %v2139, %v2139
        %v2204 = vpack.c.b16 %v2140, %v2140
        %v2205 = vpack.c.b16 %v2141, %v2141
        %v2206 = vpack.c.b16 %v2142, %v2142
        %2271 = vst [vmem:[%s258] sm:$0xf] %v2143
        %2272 = vst [vmem:[%s258 + $0x4] sm:$0xf] %v2144
        %2273 = vst [vmem:[%s258 + $0x8] sm:$0xf] %v2145
        %2274 = vst [vmem:[%s258 + $0xc] sm:$0xf] %v2146
        %2275 = vst [vmem:[%s258 + $0x10] sm:$0xf] %v2147
        %2276 = vst [vmem:[%s258 + $0x14] sm:$0xf] %v2148
        %2277 = vst [vmem:[%s258 + $0x18] sm:$0xf] %v2149
        %2278 = vst [vmem:[%s258 + $0x1c] sm:$0xf] %v2150
        %2279 = vst [vmem:[%s258 + $0x20] sm:$0xf] %v2151
        %2280 = vst [vmem:[%s258 + $0x24] sm:$0xf] %v2152
        %2281 = vst [vmem:[%s258 + $0x28] sm:$0xf] %v2153
        %2282 = vst [vmem:[%s258 + $0x2c] sm:$0xf] %v2154
        %2283 = vst [vmem:[%s258 + $0x30] sm:$0xf] %v2155
        %2284 = vst [vmem:[%s258 + $0x34] sm:$0xf] %v2156
        %2285 = vst [vmem:[%s258 + $0x38] sm:$0xf] %v2157
        %2286 = vst [vmem:[%s258 + $0x3c] sm:$0xf] %v2158
        %2287 = vst [vmem:[%s258 + $0x40] sm:$0xf] %v2159
        %2288 = vst [vmem:[%s258 + $0x44] sm:$0xf] %v2160
        %2289 = vst [vmem:[%s258 + $0x48] sm:$0xf] %v2161
        %2290 = vst [vmem:[%s258 + $0x4c] sm:$0xf] %v2162
        %2291 = vst [vmem:[%s258 + $0x50] sm:$0xf] %v2163
        %2292 = vst [vmem:[%s258 + $0x54] sm:$0xf] %v2164
        %2293 = vst [vmem:[%s258 + $0x58] sm:$0xf] %v2165
        %2294 = vst [vmem:[%s258 + $0x5c] sm:$0xf] %v2166
        %2295 = vst [vmem:[%s258 + $0x60] sm:$0xf] %v2167
        %2296 = vst [vmem:[%s258 + $0x64] sm:$0xf] %v2168
        %2297 = vst [vmem:[%s258 + $0x68] sm:$0xf] %v2169
        %2298 = vst [vmem:[%s258 + $0x6c] sm:$0xf] %v2170
        %2299 = vst [vmem:[%s258 + $0x70] sm:$0xf] %v2171
        %2300 = vst [vmem:[%s258 + $0x74] sm:$0xf] %v2172
        %2301 = vst [vmem:[%s258 + $0x78] sm:$0xf] %v2173
        %2302 = vst [vmem:[%s258 + $0x7c] sm:$0xf] %v2174
        %2303 = vst [vmem:[%s258 + $0x80] sm:$0xf] %v2175
        %2304 = vst [vmem:[%s258 + $0x84] sm:$0xf] %v2176
        %2305 = vst [vmem:[%s258 + $0x88] sm:$0xf] %v2177
        %2306 = vst [vmem:[%s258 + $0x8c] sm:$0xf] %v2178
        %2307 = vst [vmem:[%s258 + $0x90] sm:$0xf] %v2179
        %2308 = vst [vmem:[%s258 + $0x94] sm:$0xf] %v2180
        %2309 = vst [vmem:[%s258 + $0x98] sm:$0xf] %v2181
        %2310 = vst [vmem:[%s258 + $0x9c] sm:$0xf] %v2182
        %2311 = vst [vmem:[%s258 + $0xa0] sm:$0xf] %v2183
        %2312 = vst [vmem:[%s258 + $0xa4] sm:$0xf] %v2184
        %2313 = vst [vmem:[%s258 + $0xa8] sm:$0xf] %v2185
        %2314 = vst [vmem:[%s258 + $0xac] sm:$0xf] %v2186
        %2315 = vst [vmem:[%s258 + $0xb0] sm:$0xf] %v2187
        %2316 = vst [vmem:[%s258 + $0xb4] sm:$0xf] %v2188
        %2317 = vst [vmem:[%s258 + $0xb8] sm:$0xf] %v2189
        %2318 = vst [vmem:[%s258 + $0xbc] sm:$0xf] %v2190
        %2319 = vst [vmem:[%s258 + $0xc0] sm:$0xf] %v2191
        %2320 = vst [vmem:[%s258 + $0xc4] sm:$0xf] %v2192
        %2321 = vst [vmem:[%s258 + $0xc8] sm:$0xf] %v2193
        %2322 = vst [vmem:[%s258 + $0xcc] sm:$0xf] %v2194
        %2323 = vst [vmem:[%s258 + $0xd0] sm:$0xf] %v2195
        %2324 = vst [vmem:[%s258 + $0xd4] sm:$0xf] %v2196
        %2325 = vst [vmem:[%s258 + $0xd8] sm:$0xf] %v2197
        %2326 = vst [vmem:[%s258 + $0xdc] sm:$0xf] %v2198
        %2327 = vst [vmem:[%s258 + $0xe0] sm:$0xf] %v2199
        %2328 = vst [vmem:[%s258 + $0xe4] sm:$0xf] %v2200
        %2329 = vst [vmem:[%s258 + $0xe8] sm:$0xf] %v2201
        %2330 = vst [vmem:[%s258 + $0xec] sm:$0xf] %v2202
        %2331 = vst [vmem:[%s258 + $0xf0] sm:$0xf] %v2203
        %2332 = vst [vmem:[%s258 + $0xf4] sm:$0xf] %v2204
        %2333 = vst [vmem:[%s258 + $0xf8] sm:$0xf] %v2205
        %2334 = vst [vmem:[%s258 + $0xfc] sm:$0xf] %v2206
        %v2351 = vunpack.c.l.b16 %v410
        %v2352 = vunpack.c.l.b16 %v411
        %v2353 = vunpack.c.l.b16 %v412
        %v2354 = vunpack.c.l.b16 %v413
        %v2355 = vunpack.c.l.b16 %v414
        %v2356 = vunpack.c.l.b16 %v415
        %v2357 = vunpack.c.l.b16 %v416
        %v2358 = vunpack.c.l.b16 %v417
        %v2359 = vunpack.c.l.b16 %v418
        %v2360 = vunpack.c.l.b16 %v419
        %v2361 = vunpack.c.l.b16 %v420
        %v2362 = vunpack.c.l.b16 %v421
        %v2363 = vunpack.c.l.b16 %v422
        %v2364 = vunpack.c.l.b16 %v423
        %v2365 = vunpack.c.l.b16 %v424
        %v2366 = vunpack.c.l.b16 %v425
        %v2367 = vpack.c.b16 %v2352, %v2351
        %v2368 = vpack.c.b16 %v2354, %v2353
        %v2369 = vpack.c.b16 %v2356, %v2355
        %v2370 = vpack.c.b16 %v2358, %v2357
        %v2371 = vpack.c.b16 %v2360, %v2359
        %v2372 = vpack.c.b16 %v2362, %v2361
        %v2373 = vpack.c.b16 %v2364, %v2363
        %v2374 = vpack.c.b16 %v2366, %v2365
        %2383 = vmatprep.subr.bf16.mxu0 0
        %2384 = vmatpush1.bf16.msra.mxu0 %v2374
        %2385 = vmatprep.subr.bf16.mxu0 0
        %2386 = vmatpush1.bf16.msra.mxu0 %v2373
        %2387 = vmatprep.subr.bf16.mxu0 0
        %2388 = vmatpush1.bf16.msra.mxu0 %v2372
        %2389 = vmatprep.subr.bf16.mxu0 0
        %2390 = vmatpush1.bf16.msra.mxu0 %v2371
        %2391 = vmatprep.subr.bf16.mxu0 0
        %2392 = vmatpush1.bf16.msra.mxu0 %v2370
        %2393 = vmatprep.subr.bf16.mxu0 0
        %2394 = vmatpush1.bf16.msra.mxu0 %v2369
        %2395 = vmatprep.subr.bf16.mxu0 0
        %2396 = vmatpush1.bf16.msra.mxu0 %v2368
        %2397 = vmatprep.subr.bf16.mxu0 0
        %2398 = vmatpush1.bf16.msra.mxu0 %v2367
        %2399 = vmatprep.subr.bf16.mxu0 0
        %2400 = vmatpush2.bf16.msra.mxu0 0
        %2401 = vmatprep.subr.bf16.mxu0 0
        %2402 = vmatpush2.bf16.msra.mxu0 0
        %2403 = vmatprep.subr.bf16.mxu0 0
        %2404 = vmatpush2.bf16.msra.mxu0 0
        %2405 = vmatprep.subr.bf16.mxu0 0
        %2406 = vmatpush2.bf16.msra.mxu0 0
        %2407 = vmatprep.subr.bf16.mxu0 0
        %2408 = vmatpush2.bf16.msra.mxu0 0
        %2409 = vmatprep.subr.bf16.mxu0 0
        %2410 = vmatpush2.bf16.msra.mxu0 0
        %2411 = vmatprep.subr.bf16.mxu0 0
        %2412 = vmatpush2.bf16.msra.mxu0 0
        %2413 = vmatprep.subr.bf16.mxu0 0
        %2414 = vmatpush2.bf16.msra.mxu0 0
        %2415 = vmatprep.mubr.bf16.mxu0 0
        %2416 = vmatmul.mubr.bf16.gmra.mxu0 %v2015
        %v2417 = vpop.f32.mrf.mxu0
        %v2418 = vadd.f32 0.0, %v2417
        %v2419 = vpop.f32.mrf.mxu0
        %v2420 = vpop.f32.mrf.mxu0
        %v2421 = vadd.f32 0.0, %v2420
        %v2422 = vpop.f32.mrf.mxu0
        %2423 = vmatprep.mubr.bf16.mxu0 0
        %2424 = vmatmul.mubr.bf16.gmra.mxu0 %v2016
        %v2425 = vpop.f32.mrf.mxu0
        %v2426 = vadd.f32 0.0, %v2425
        %v2427 = vpop.f32.mrf.mxu0
        %v2428 = vpop.f32.mrf.mxu0
        %v2429 = vadd.f32 0.0, %v2428
        %v2430 = vpop.f32.mrf.mxu0
        %2431 = vmatprep.mubr.bf16.mxu0 0
        %2432 = vmatmul.mubr.bf16.gmra.mxu0 %v2017
        %v2433 = vpop.f32.mrf.mxu0
        %v2434 = vadd.f32 0.0, %v2433
        %v2435 = vpop.f32.mrf.mxu0
        %v2436 = vpop.f32.mrf.mxu0
        %v2437 = vadd.f32 0.0, %v2436
        %v2438 = vpop.f32.mrf.mxu0
        %2439 = vmatprep.mubr.bf16.mxu0 0
        %2440 = vmatmul.mubr.bf16.gmra.mxu0 %v2018
        %v2441 = vpop.f32.mrf.mxu0
        %v2442 = vadd.f32 0.0, %v2441
        %v2443 = vpop.f32.mrf.mxu0
        %v2444 = vpop.f32.mrf.mxu0
        %v2445 = vadd.f32 0.0, %v2444
        %v2446 = vpop.f32.mrf.mxu0
        %2447 = vmatprep.mubr.bf16.mxu0 0
        %2448 = vmatmul.mubr.bf16.gmra.mxu0 %v2019
        %v2449 = vpop.f32.mrf.mxu0
        %v2450 = vadd.f32 0.0, %v2449
        %v2451 = vpop.f32.mrf.mxu0
        %v2452 = vpop.f32.mrf.mxu0
        %v2453 = vadd.f32 0.0, %v2452
        %v2454 = vpop.f32.mrf.mxu0
        %2455 = vmatprep.mubr.bf16.mxu0 0
        %2456 = vmatmul.mubr.bf16.gmra.mxu0 %v2020
        %v2457 = vpop.f32.mrf.mxu0
        %v2458 = vadd.f32 0.0, %v2457
        %v2459 = vpop.f32.mrf.mxu0
        %v2460 = vpop.f32.mrf.mxu0
        %v2461 = vadd.f32 0.0, %v2460
        %v2462 = vpop.f32.mrf.mxu0
        %2463 = vmatprep.mubr.bf16.mxu0 0
        %2464 = vmatmul.mubr.bf16.gmra.mxu0 %v2021
        %v2465 = vpop.f32.mrf.mxu0
        %v2466 = vadd.f32 0.0, %v2465
        %v2467 = vpop.f32.mrf.mxu0
        %v2468 = vpop.f32.mrf.mxu0
        %v2469 = vadd.f32 0.0, %v2468
        %v2470 = vpop.f32.mrf.mxu0
        %2471 = vmatprep.mubr.bf16.mxu0 0
        %2472 = vmatmul.mubr.bf16.gmra.mxu0 %v2022
        %v2473 = vpop.f32.mrf.mxu0
        %v2474 = vadd.f32 0.0, %v2473
        %v2475 = vpop.f32.mrf.mxu0
        %v2476 = vpop.f32.mrf.mxu0
        %v2477 = vadd.f32 0.0, %v2476
        %v2478 = vpop.f32.mrf.mxu0
        %2479 = vdwg.mxu0
        %v2496 = vunpack.c.l.b16 %v426
        %v2497 = vunpack.c.l.b16 %v427
        %v2498 = vunpack.c.l.b16 %v428
        %v2499 = vunpack.c.l.b16 %v429
        %v2500 = vunpack.c.l.b16 %v430
        %v2501 = vunpack.c.l.b16 %v431
        %v2502 = vunpack.c.l.b16 %v432
        %v2503 = vunpack.c.l.b16 %v433
        %v2504 = vunpack.c.l.b16 %v434
        %v2505 = vunpack.c.l.b16 %v435
        %v2506 = vunpack.c.l.b16 %v436
        %v2507 = vunpack.c.l.b16 %v437
        %v2508 = vunpack.c.l.b16 %v438
        %v2509 = vunpack.c.l.b16 %v439
        %v2510 = vunpack.c.l.b16 %v440
        %v2511 = vunpack.c.l.b16 %v441
        %v2512 = vpack.c.b16 %v2497, %v2496
        %v2513 = vpack.c.b16 %v2499, %v2498
        %v2514 = vpack.c.b16 %v2501, %v2500
        %v2515 = vpack.c.b16 %v2503, %v2502
        %v2516 = vpack.c.b16 %v2505, %v2504
        %v2517 = vpack.c.b16 %v2507, %v2506
        %v2518 = vpack.c.b16 %v2509, %v2508
        %v2519 = vpack.c.b16 %v2511, %v2510
        %2528 = vmatprep.subr.bf16.mxu0 0
        %2529 = vmatpush1.bf16.msra.mxu0 %v2519
        %2530 = vmatprep.subr.bf16.mxu0 0
        %2531 = vmatpush1.bf16.msra.mxu0 %v2518
        %2532 = vmatprep.subr.bf16.mxu0 0
        %2533 = vmatpush1.bf16.msra.mxu0 %v2517
        %2534 = vmatprep.subr.bf16.mxu0 0
        %2535 = vmatpush1.bf16.msra.mxu0 %v2516
        %2536 = vmatprep.subr.bf16.mxu0 0
        %2537 = vmatpush1.bf16.msra.mxu0 %v2515
        %2538 = vmatprep.subr.bf16.mxu0 0
        %2539 = vmatpush1.bf16.msra.mxu0 %v2514
        %2540 = vmatprep.subr.bf16.mxu0 0
        %2541 = vmatpush1.bf16.msra.mxu0 %v2513
        %2542 = vmatprep.subr.bf16.mxu0 0
        %2543 = vmatpush1.bf16.msra.mxu0 %v2512
        %2544 = vmatprep.subr.bf16.mxu0 0
        %2545 = vmatpush2.bf16.msra.mxu0 0
        %2546 = vmatprep.subr.bf16.mxu0 0
        %2547 = vmatpush2.bf16.msra.mxu0 0
        %2548 = vmatprep.subr.bf16.mxu0 0
        %2549 = vmatpush2.bf16.msra.mxu0 0
        %2550 = vmatprep.subr.bf16.mxu0 0
        %2551 = vmatpush2.bf16.msra.mxu0 0
        %2552 = vmatprep.subr.bf16.mxu0 0
        %2553 = vmatpush2.bf16.msra.mxu0 0
        %2554 = vmatprep.subr.bf16.mxu0 0
        %2555 = vmatpush2.bf16.msra.mxu0 0
        %2556 = vmatprep.subr.bf16.mxu0 0
        %2557 = vmatpush2.bf16.msra.mxu0 0
        %2558 = vmatprep.subr.bf16.mxu0 0
        %2559 = vmatpush2.bf16.msra.mxu0 0
        %2560 = vmatprep.mubr.bf16.mxu0 0
        %2561 = vmatmul.mubr.bf16.gmra.mxu0 %v2023
        %v2562 = vpop.f32.mrf.mxu0
        %v2563 = vadd.f32 0.0, %v2562
        %v2564 = vpop.f32.mrf.mxu0
        %v2565 = vpop.f32.mrf.mxu0
        %v2566 = vadd.f32 0.0, %v2565
        %v2567 = vpop.f32.mrf.mxu0
        %2568 = vmatprep.mubr.bf16.mxu0 0
        %2569 = vmatmul.mubr.bf16.gmra.mxu0 %v2024
        %v2570 = vpop.f32.mrf.mxu0
        %v2571 = vadd.f32 0.0, %v2570
        %v2572 = vpop.f32.mrf.mxu0
        %v2573 = vpop.f32.mrf.mxu0
        %v2574 = vadd.f32 0.0, %v2573
        %v2575 = vpop.f32.mrf.mxu0
        %2576 = vmatprep.mubr.bf16.mxu0 0
        %2577 = vmatmul.mubr.bf16.gmra.mxu0 %v2025
        %v2578 = vpop.f32.mrf.mxu0
        %v2579 = vadd.f32 0.0, %v2578
        %v2580 = vpop.f32.mrf.mxu0
        %v2581 = vpop.f32.mrf.mxu0
        %v2582 = vadd.f32 0.0, %v2581
        %v2583 = vpop.f32.mrf.mxu0
        %2584 = vmatprep.mubr.bf16.mxu0 0
        %2585 = vmatmul.mubr.bf16.gmra.mxu0 %v2026
        %v2586 = vpop.f32.mrf.mxu0
        %v2587 = vadd.f32 0.0, %v2586
        %v2588 = vpop.f32.mrf.mxu0
        %v2589 = vpop.f32.mrf.mxu0
        %v2590 = vadd.f32 0.0, %v2589
        %v2591 = vpop.f32.mrf.mxu0
        %2592 = vmatprep.mubr.bf16.mxu0 0
        %2593 = vmatmul.mubr.bf16.gmra.mxu0 %v2027
        %v2594 = vpop.f32.mrf.mxu0
        %v2595 = vadd.f32 0.0, %v2594
        %v2596 = vpop.f32.mrf.mxu0
        %v2597 = vpop.f32.mrf.mxu0
        %v2598 = vadd.f32 0.0, %v2597
        %v2599 = vpop.f32.mrf.mxu0
        %2600 = vmatprep.mubr.bf16.mxu0 0
        %2601 = vmatmul.mubr.bf16.gmra.mxu0 %v2028
        %v2602 = vpop.f32.mrf.mxu0
        %v2603 = vadd.f32 0.0, %v2602
        %v2604 = vpop.f32.mrf.mxu0
        %v2605 = vpop.f32.mrf.mxu0
        %v2606 = vadd.f32 0.0, %v2605
        %v2607 = vpop.f32.mrf.mxu0
        %2608 = vmatprep.mubr.bf16.mxu0 0
        %2609 = vmatmul.mubr.bf16.gmra.mxu0 %v2029
        %v2610 = vpop.f32.mrf.mxu0
        %v2611 = vadd.f32 0.0, %v2610
        %v2612 = vpop.f32.mrf.mxu0
        %v2613 = vpop.f32.mrf.mxu0
        %v2614 = vadd.f32 0.0, %v2613
        %v2615 = vpop.f32.mrf.mxu0
        %2616 = vmatprep.mubr.bf16.mxu0 0
        %2617 = vmatmul.mubr.bf16.gmra.mxu0 %v2030
        %v2618 = vpop.f32.mrf.mxu0
        %v2619 = vadd.f32 0.0, %v2618
        %v2620 = vpop.f32.mrf.mxu0
        %v2621 = vpop.f32.mrf.mxu0
        %v2622 = vadd.f32 0.0, %v2621
        %v2623 = vpop.f32.mrf.mxu0
        %2624 = vdwg.mxu0
        %v2641 = vunpack.c.l.b16 %v442
        %v2642 = vunpack.c.l.b16 %v443
        %v2643 = vunpack.c.l.b16 %v444
        %v2644 = vunpack.c.l.b16 %v445
        %v2645 = vunpack.c.l.b16 %v446
        %v2646 = vunpack.c.l.b16 %v447
        %v2647 = vunpack.c.l.b16 %v448
        %v2648 = vunpack.c.l.b16 %v449
        %v2649 = vunpack.c.l.b16 %v450
        %v2650 = vunpack.c.l.b16 %v451
        %v2651 = vunpack.c.l.b16 %v452
        %v2652 = vunpack.c.l.b16 %v453
        %v2653 = vunpack.c.l.b16 %v454
        %v2654 = vunpack.c.l.b16 %v455
        %v2655 = vunpack.c.l.b16 %v456
        %v2656 = vunpack.c.l.b16 %v457
        %v2657 = vpack.c.b16 %v2642, %v2641
        %v2658 = vpack.c.b16 %v2644, %v2643
        %v2659 = vpack.c.b16 %v2646, %v2645
        %v2660 = vpack.c.b16 %v2648, %v2647
        %v2661 = vpack.c.b16 %v2650, %v2649
        %v2662 = vpack.c.b16 %v2652, %v2651
        %v2663 = vpack.c.b16 %v2654, %v2653
        %v2664 = vpack.c.b16 %v2656, %v2655
        %2673 = vmatprep.subr.bf16.mxu0 0
        %2674 = vmatpush1.bf16.msra.mxu0 %v2664
        %2675 = vmatprep.subr.bf16.mxu0 0
        %2676 = vmatpush1.bf16.msra.mxu0 %v2663
        %2677 = vmatprep.subr.bf16.mxu0 0
        %2678 = vmatpush1.bf16.msra.mxu0 %v2662
        %2679 = vmatprep.subr.bf16.mxu0 0
        %2680 = vmatpush1.bf16.msra.mxu0 %v2661
        %2681 = vmatprep.subr.bf16.mxu0 0
        %2682 = vmatpush1.bf16.msra.mxu0 %v2660
        %2683 = vmatprep.subr.bf16.mxu0 0
        %2684 = vmatpush1.bf16.msra.mxu0 %v2659
        %2685 = vmatprep.subr.bf16.mxu0 0
        %2686 = vmatpush1.bf16.msra.mxu0 %v2658
        %2687 = vmatprep.subr.bf16.mxu0 0
        %2688 = vmatpush1.bf16.msra.mxu0 %v2657
        %2689 = vmatprep.subr.bf16.mxu0 0
        %2690 = vmatpush2.bf16.msra.mxu0 0
        %2691 = vmatprep.subr.bf16.mxu0 0
        %2692 = vmatpush2.bf16.msra.mxu0 0
        %2693 = vmatprep.subr.bf16.mxu0 0
        %2694 = vmatpush2.bf16.msra.mxu0 0
        %2695 = vmatprep.subr.bf16.mxu0 0
        %2696 = vmatpush2.bf16.msra.mxu0 0
        %2697 = vmatprep.subr.bf16.mxu0 0
        %2698 = vmatpush2.bf16.msra.mxu0 0
        %2699 = vmatprep.subr.bf16.mxu0 0
        %2700 = vmatpush2.bf16.msra.mxu0 0
        %2701 = vmatprep.subr.bf16.mxu0 0
        %2702 = vmatpush2.bf16.msra.mxu0 0
        %2703 = vmatprep.subr.bf16.mxu0 0
        %2704 = vmatpush2.bf16.msra.mxu0 0
        %2705 = vmatprep.mubr.bf16.mxu0 0
        %2706 = vmatmul.mubr.bf16.gmra.mxu0 %v2031
        %v2707 = vpop.f32.mrf.mxu0
        %v2708 = vadd.f32 0.0, %v2707
        %v2709 = vpop.f32.mrf.mxu0
        %v2710 = vpop.f32.mrf.mxu0
        %v2711 = vadd.f32 0.0, %v2710
        %v2712 = vpop.f32.mrf.mxu0
        %2713 = vmatprep.mubr.bf16.mxu0 0
        %2714 = vmatmul.mubr.bf16.gmra.mxu0 %v2032
        %v2715 = vpop.f32.mrf.mxu0
        %v2716 = vadd.f32 0.0, %v2715
        %v2717 = vpop.f32.mrf.mxu0
        %v2718 = vpop.f32.mrf.mxu0
        %v2719 = vadd.f32 0.0, %v2718
        %v2720 = vpop.f32.mrf.mxu0
        %2721 = vmatprep.mubr.bf16.mxu0 0
        %2722 = vmatmul.mubr.bf16.gmra.mxu0 %v2033
        %v2723 = vpop.f32.mrf.mxu0
        %v2724 = vadd.f32 0.0, %v2723
        %v2725 = vpop.f32.mrf.mxu0
        %v2726 = vpop.f32.mrf.mxu0
        %v2727 = vadd.f32 0.0, %v2726
        %v2728 = vpop.f32.mrf.mxu0
        %2729 = vmatprep.mubr.bf16.mxu0 0
        %2730 = vmatmul.mubr.bf16.gmra.mxu0 %v2034
        %v2731 = vpop.f32.mrf.mxu0
        %v2732 = vadd.f32 0.0, %v2731
        %v2733 = vpop.f32.mrf.mxu0
        %v2734 = vpop.f32.mrf.mxu0
        %v2735 = vadd.f32 0.0, %v2734
        %v2736 = vpop.f32.mrf.mxu0
        %2737 = vmatprep.mubr.bf16.mxu0 0
        %2738 = vmatmul.mubr.bf16.gmra.mxu0 %v2035
        %v2739 = vpop.f32.mrf.mxu0
        %v2740 = vadd.f32 0.0, %v2739
        %v2741 = vpop.f32.mrf.mxu0
        %v2742 = vpop.f32.mrf.mxu0
        %v2743 = vadd.f32 0.0, %v2742
        %v2744 = vpop.f32.mrf.mxu0
        %2745 = vmatprep.mubr.bf16.mxu0 0
        %2746 = vmatmul.mubr.bf16.gmra.mxu0 %v2036
        %v2747 = vpop.f32.mrf.mxu0
        %v2748 = vadd.f32 0.0, %v2747
        %v2749 = vpop.f32.mrf.mxu0
        %v2750 = vpop.f32.mrf.mxu0
        %v2751 = vadd.f32 0.0, %v2750
        %v2752 = vpop.f32.mrf.mxu0
        %2753 = vmatprep.mubr.bf16.mxu0 0
        %2754 = vmatmul.mubr.bf16.gmra.mxu0 %v2037
        %v2755 = vpop.f32.mrf.mxu0
        %v2756 = vadd.f32 0.0, %v2755
        %v2757 = vpop.f32.mrf.mxu0
        %v2758 = vpop.f32.mrf.mxu0
        %v2759 = vadd.f32 0.0, %v2758
        %v2760 = vpop.f32.mrf.mxu0
        %2761 = vmatprep.mubr.bf16.mxu0 0
        %2762 = vmatmul.mubr.bf16.gmra.mxu0 %v2038
        %v2763 = vpop.f32.mrf.mxu0
        %v2764 = vadd.f32 0.0, %v2763
        %v2765 = vpop.f32.mrf.mxu0
        %v2766 = vpop.f32.mrf.mxu0
        %v2767 = vadd.f32 0.0, %v2766
        %v2768 = vpop.f32.mrf.mxu0
        %2769 = vdwg.mxu0
        %v2786 = vunpack.c.l.b16 %v458
        %v2787 = vunpack.c.l.b16 %v459
        %v2788 = vunpack.c.l.b16 %v460
        %v2789 = vunpack.c.l.b16 %v461
        %v2790 = vunpack.c.l.b16 %v462
        %v2791 = vunpack.c.l.b16 %v463
        %v2792 = vunpack.c.l.b16 %v464
        %v2793 = vunpack.c.l.b16 %v465
        %v2794 = vunpack.c.l.b16 %v466
        %v2795 = vunpack.c.l.b16 %v467
        %v2796 = vunpack.c.l.b16 %v468
        %v2797 = vunpack.c.l.b16 %v469
        %v2798 = vunpack.c.l.b16 %v470
        %v2799 = vunpack.c.l.b16 %v471
        %v2800 = vunpack.c.l.b16 %v472
        %v2801 = vunpack.c.l.b16 %v473
        %v2802 = vpack.c.b16 %v2787, %v2786
        %v2803 = vpack.c.b16 %v2789, %v2788
        %v2804 = vpack.c.b16 %v2791, %v2790
        %v2805 = vpack.c.b16 %v2793, %v2792
        %v2806 = vpack.c.b16 %v2795, %v2794
        %v2807 = vpack.c.b16 %v2797, %v2796
        %v2808 = vpack.c.b16 %v2799, %v2798
        %v2809 = vpack.c.b16 %v2801, %v2800
        %2818 = vmatprep.subr.bf16.mxu0 0
        %2819 = vmatpush1.bf16.msra.mxu0 %v2809
        %2820 = vmatprep.subr.bf16.mxu0 0
        %2821 = vmatpush1.bf16.msra.mxu0 %v2808
        %2822 = vmatprep.subr.bf16.mxu0 0
        %2823 = vmatpush1.bf16.msra.mxu0 %v2807
        %2824 = vmatprep.subr.bf16.mxu0 0
        %2825 = vmatpush1.bf16.msra.mxu0 %v2806
        %2826 = vmatprep.subr.bf16.mxu0 0
        %2827 = vmatpush1.bf16.msra.mxu0 %v2805
        %2828 = vmatprep.subr.bf16.mxu0 0
        %2829 = vmatpush1.bf16.msra.mxu0 %v2804
        %2830 = vmatprep.subr.bf16.mxu0 0
        %2831 = vmatpush1.bf16.msra.mxu0 %v2803
        %2832 = vmatprep.subr.bf16.mxu0 0
        %2833 = vmatpush1.bf16.msra.mxu0 %v2802
        %2834 = vmatprep.subr.bf16.mxu0 0
        %2835 = vmatpush2.bf16.msra.mxu0 0
        %2836 = vmatprep.subr.bf16.mxu0 0
        %2837 = vmatpush2.bf16.msra.mxu0 0
        %2838 = vmatprep.subr.bf16.mxu0 0
        %2839 = vmatpush2.bf16.msra.mxu0 0
        %2840 = vmatprep.subr.bf16.mxu0 0
        %2841 = vmatpush2.bf16.msra.mxu0 0
        %2842 = vmatprep.subr.bf16.mxu0 0
        %2843 = vmatpush2.bf16.msra.mxu0 0
        %2844 = vmatprep.subr.bf16.mxu0 0
        %2845 = vmatpush2.bf16.msra.mxu0 0
        %2846 = vmatprep.subr.bf16.mxu0 0
        %2847 = vmatpush2.bf16.msra.mxu0 0
        %2848 = vmatprep.subr.bf16.mxu0 0
        %2849 = vmatpush2.bf16.msra.mxu0 0
        %2850 = vmatprep.mubr.bf16.mxu0 0
        %2851 = vmatmul.mubr.bf16.gmra.mxu0 %v2039
        %v2852 = vpop.f32.mrf.mxu0
        %v2853 = vadd.f32 0.0, %v2852
        %v2854 = vpop.f32.mrf.mxu0
        %v2855 = vpop.f32.mrf.mxu0
        %v2856 = vadd.f32 0.0, %v2855
        %v2857 = vpop.f32.mrf.mxu0
        %2858 = vmatprep.mubr.bf16.mxu0 0
        %2859 = vmatmul.mubr.bf16.gmra.mxu0 %v2040
        %v2860 = vpop.f32.mrf.mxu0
        %v2861 = vadd.f32 0.0, %v2860
        %v2862 = vpop.f32.mrf.mxu0
        %v2863 = vpop.f32.mrf.mxu0
        %v2864 = vadd.f32 0.0, %v2863
        %v2865 = vpop.f32.mrf.mxu0
        %2866 = vmatprep.mubr.bf16.mxu0 0
        %2867 = vmatmul.mubr.bf16.gmra.mxu0 %v2041
        %v2868 = vpop.f32.mrf.mxu0
        %v2869 = vadd.f32 0.0, %v2868
        %v2870 = vpop.f32.mrf.mxu0
        %v2871 = vpop.f32.mrf.mxu0
        %v2872 = vadd.f32 0.0, %v2871
        %v2873 = vpop.f32.mrf.mxu0
        %2874 = vmatprep.mubr.bf16.mxu0 0
        %2875 = vmatmul.mubr.bf16.gmra.mxu0 %v2042
        %v2876 = vpop.f32.mrf.mxu0
        %v2877 = vadd.f32 0.0, %v2876
        %v2878 = vpop.f32.mrf.mxu0
        %v2879 = vpop.f32.mrf.mxu0
        %v2880 = vadd.f32 0.0, %v2879
        %v2881 = vpop.f32.mrf.mxu0
        %2882 = vmatprep.mubr.bf16.mxu0 0
        %2883 = vmatmul.mubr.bf16.gmra.mxu0 %v2043
        %v2884 = vpop.f32.mrf.mxu0
        %v2885 = vadd.f32 0.0, %v2884
        %v2886 = vpop.f32.mrf.mxu0
        %v2887 = vpop.f32.mrf.mxu0
        %v2888 = vadd.f32 0.0, %v2887
        %v2889 = vpop.f32.mrf.mxu0
        %2890 = vmatprep.mubr.bf16.mxu0 0
        %2891 = vmatmul.mubr.bf16.gmra.mxu0 %v2044
        %v2892 = vpop.f32.mrf.mxu0
        %v2893 = vadd.f32 0.0, %v2892
        %v2894 = vpop.f32.mrf.mxu0
        %v2895 = vpop.f32.mrf.mxu0
        %v2896 = vadd.f32 0.0, %v2895
        %v2897 = vpop.f32.mrf.mxu0
        %2898 = vmatprep.mubr.bf16.mxu0 0
        %2899 = vmatmul.mubr.bf16.gmra.mxu0 %v2045
        %v2900 = vpop.f32.mrf.mxu0
        %v2901 = vadd.f32 0.0, %v2900
        %v2902 = vpop.f32.mrf.mxu0
        %v2903 = vpop.f32.mrf.mxu0
        %v2904 = vadd.f32 0.0, %v2903
        %v2905 = vpop.f32.mrf.mxu0
        %2906 = vmatprep.mubr.bf16.mxu0 0
        %2907 = vmatmul.mubr.bf16.gmra.mxu0 %v2046
        %v2908 = vpop.f32.mrf.mxu0
        %v2909 = vadd.f32 0.0, %v2908
        %v2910 = vpop.f32.mrf.mxu0
        %v2911 = vpop.f32.mrf.mxu0
        %v2912 = vadd.f32 0.0, %v2911
        %v2913 = vpop.f32.mrf.mxu0
        %2914 = vdwg.mxu0
        %2915 = vst.msk [vmem:[#allocation2] sm:$0xff] %vm554, %v2418
        %2916 = vst.msk [vmem:[#allocation2 + $0x8] sm:$0xff] %vm554, %v2421
        %2917 = vst.msk [vmem:[#allocation2 + $0x10] sm:$0xff] %vm554, %v2426
        %2918 = vst.msk [vmem:[#allocation2 + $0x18] sm:$0xff] %vm554, %v2429
        %2919 = vst.msk [vmem:[#allocation2 + $0x20] sm:$0xff] %vm554, %v2434
        %2920 = vst.msk [vmem:[#allocation2 + $0x28] sm:$0xff] %vm554, %v2437
        %2921 = vst.msk [vmem:[#allocation2 + $0x30] sm:$0xff] %vm554, %v2442
        %2922 = vst.msk [vmem:[#allocation2 + $0x38] sm:$0xff] %vm554, %v2445
        %2923 = vst.msk [vmem:[#allocation2 + $0x40] sm:$0xff] %vm554, %v2450
        %2924 = vst.msk [vmem:[#allocation2 + $0x48] sm:$0xff] %vm554, %v2453
        %2925 = vst.msk [vmem:[#allocation2 + $0x50] sm:$0xff] %vm554, %v2458
        %2926 = vst.msk [vmem:[#allocation2 + $0x58] sm:$0xff] %vm554, %v2461
        %2927 = vst.msk [vmem:[#allocation2 + $0x60] sm:$0xff] %vm554, %v2466
        %2928 = vst.msk [vmem:[#allocation2 + $0x68] sm:$0xff] %vm554, %v2469
        %2929 = vst.msk [vmem:[#allocation2 + $0x70] sm:$0xff] %vm554, %v2474
        %2930 = vst.msk [vmem:[#allocation2 + $0x78] sm:$0xff] %vm554, %v2477
        %2947 = vrot.lane.b32.xlu0 %v2563, 32
        %v2948 = vpop.permute.xlu0 %2947
        %2949 = vrot.lane.b32.xlu0 %v2566, 32
        %v2950 = vpop.permute.xlu0 %2949
        %2951 = vrot.lane.b32.xlu0 %v2571, 32
        %v2952 = vpop.permute.xlu0 %2951
        %2953 = vrot.lane.b32.xlu0 %v2574, 32
        %v2954 = vpop.permute.xlu0 %2953
        %2955 = vrot.lane.b32.xlu0 %v2579, 32
        %v2956 = vpop.permute.xlu0 %2955
        %2957 = vrot.lane.b32.xlu0 %v2582, 32
        %v2958 = vpop.permute.xlu0 %2957
        %2959 = vrot.lane.b32.xlu0 %v2587, 32
        %v2960 = vpop.permute.xlu0 %2959
        %2961 = vrot.lane.b32.xlu0 %v2590, 32
        %v2962 = vpop.permute.xlu0 %2961
        %2963 = vrot.lane.b32.xlu0 %v2595, 32
        %v2964 = vpop.permute.xlu0 %2963
        %2965 = vrot.lane.b32.xlu0 %v2598, 32
        %v2966 = vpop.permute.xlu0 %2965
        %2967 = vrot.lane.b32.xlu0 %v2603, 32
        %v2968 = vpop.permute.xlu0 %2967
        %2969 = vrot.lane.b32.xlu0 %v2606, 32
        %v2970 = vpop.permute.xlu0 %2969
        %2971 = vrot.lane.b32.xlu0 %v2611, 32
        %v2972 = vpop.permute.xlu0 %2971
        %2973 = vrot.lane.b32.xlu0 %v2614, 32
        %v2974 = vpop.permute.xlu0 %2973
        %2975 = vrot.lane.b32.xlu0 %v2619, 32
        %v2976 = vpop.permute.xlu0 %2975
        %2977 = vrot.lane.b32.xlu0 %v2622, 32
        %v2978 = vpop.permute.xlu0 %2977
        %vm2995 = vcmask 523520
        %2996 = vst.msk [vmem:[#allocation2] sm:$0xff] %vm2995, %v2948
        %2997 = vst.msk [vmem:[#allocation2 + $0x8] sm:$0xff] %vm2995, %v2950
        %2998 = vst.msk [vmem:[#allocation2 + $0x10] sm:$0xff] %vm2995, %v2952
        %2999 = vst.msk [vmem:[#allocation2 + $0x18] sm:$0xff] %vm2995, %v2954
        %3000 = vst.msk [vmem:[#allocation2 + $0x20] sm:$0xff] %vm2995, %v2956
        %3001 = vst.msk [vmem:[#allocation2 + $0x28] sm:$0xff] %vm2995, %v2958
        %3002 = vst.msk [vmem:[#allocation2 + $0x30] sm:$0xff] %vm2995, %v2960
        %3003 = vst.msk [vmem:[#allocation2 + $0x38] sm:$0xff] %vm2995, %v2962
        %3004 = vst.msk [vmem:[#allocation2 + $0x40] sm:$0xff] %vm2995, %v2964
        %3005 = vst.msk [vmem:[#allocation2 + $0x48] sm:$0xff] %vm2995, %v2966
        %3006 = vst.msk [vmem:[#allocation2 + $0x50] sm:$0xff] %vm2995, %v2968
        %3007 = vst.msk [vmem:[#allocation2 + $0x58] sm:$0xff] %vm2995, %v2970
        %3008 = vst.msk [vmem:[#allocation2 + $0x60] sm:$0xff] %vm2995, %v2972
        %3009 = vst.msk [vmem:[#allocation2 + $0x68] sm:$0xff] %vm2995, %v2974
        %3010 = vst.msk [vmem:[#allocation2 + $0x70] sm:$0xff] %vm2995, %v2976
        %3011 = vst.msk [vmem:[#allocation2 + $0x78] sm:$0xff] %vm2995, %v2978
        %3028 = vrot.lane.b32.xlu0 %v2708, 64
        %v3029 = vpop.permute.xlu0 %3028
        %3030 = vrot.lane.b32.xlu0 %v2711, 64
        %v3031 = vpop.permute.xlu0 %3030
        %3032 = vrot.lane.b32.xlu0 %v2716, 64
        %v3033 = vpop.permute.xlu0 %3032
        %3034 = vrot.lane.b32.xlu0 %v2719, 64
        %v3035 = vpop.permute.xlu0 %3034
        %3036 = vrot.lane.b32.xlu0 %v2724, 64
        %v3037 = vpop.permute.xlu0 %3036
        %3038 = vrot.lane.b32.xlu0 %v2727, 64
        %v3039 = vpop.permute.xlu0 %3038
        %3040 = vrot.lane.b32.xlu0 %v2732, 64
        %v3041 = vpop.permute.xlu0 %3040
        %3042 = vrot.lane.b32.xlu0 %v2735, 64
        %v3043 = vpop.permute.xlu0 %3042
        %3044 = vrot.lane.b32.xlu0 %v2740, 64
        %v3045 = vpop.permute.xlu0 %3044
        %3046 = vrot.lane.b32.xlu0 %v2743, 64
        %v3047 = vpop.permute.xlu0 %3046
        %3048 = vrot.lane.b32.xlu0 %v2748, 64
        %v3049 = vpop.permute.xlu0 %3048
        %3050 = vrot.lane.b32.xlu0 %v2751, 64
        %v3051 = vpop.permute.xlu0 %3050
        %3052 = vrot.lane.b32.xlu0 %v2756, 64
        %v3053 = vpop.permute.xlu0 %3052
        %3054 = vrot.lane.b32.xlu0 %v2759, 64
        %v3055 = vpop.permute.xlu0 %3054
        %3056 = vrot.lane.b32.xlu0 %v2764, 64
        %v3057 = vpop.permute.xlu0 %3056
        %3058 = vrot.lane.b32.xlu0 %v2767, 64
        %v3059 = vpop.permute.xlu0 %3058
        %vm3076 = vcmask 785920
        %3077 = vst.msk [vmem:[#allocation2] sm:$0xff] %vm3076, %v3029
        %3078 = vst.msk [vmem:[#allocation2 + $0x8] sm:$0xff] %vm3076, %v3031
        %3079 = vst.msk [vmem:[#allocation2 + $0x10] sm:$0xff] %vm3076, %v3033
        %3080 = vst.msk [vmem:[#allocation2 + $0x18] sm:$0xff] %vm3076, %v3035
        %3081 = vst.msk [vmem:[#allocation2 + $0x20] sm:$0xff] %vm3076, %v3037
        %3082 = vst.msk [vmem:[#allocation2 + $0x28] sm:$0xff] %vm3076, %v3039
        %3083 = vst.msk [vmem:[#allocation2 + $0x30] sm:$0xff] %vm3076, %v3041
        %3084 = vst.msk [vmem:[#allocation2 + $0x38] sm:$0xff] %vm3076, %v3043
        %3085 = vst.msk [vmem:[#allocation2 + $0x40] sm:$0xff] %vm3076, %v3045
        %3086 = vst.msk [vmem:[#allocation2 + $0x48] sm:$0xff] %vm3076, %v3047
        %3087 = vst.msk [vmem:[#allocation2 + $0x50] sm:$0xff] %vm3076, %v3049
        %3088 = vst.msk [vmem:[#allocation2 + $0x58] sm:$0xff] %vm3076, %v3051
        %3089 = vst.msk [vmem:[#allocation2 + $0x60] sm:$0xff] %vm3076, %v3053
        %3090 = vst.msk [vmem:[#allocation2 + $0x68] sm:$0xff] %vm3076, %v3055
        %3091 = vst.msk [vmem:[#allocation2 + $0x70] sm:$0xff] %vm3076, %v3057
        %3092 = vst.msk [vmem:[#allocation2 + $0x78] sm:$0xff] %vm3076, %v3059
        %3109 = vrot.lane.b32.xlu0 %v2853, 96
        %v3110 = vpop.permute.xlu0 %3109
        %3111 = vrot.lane.b32.xlu0 %v2856, 96
        %v3112 = vpop.permute.xlu0 %3111
        %3113 = vrot.lane.b32.xlu0 %v2861, 96
        %v3114 = vpop.permute.xlu0 %3113
        %3115 = vrot.lane.b32.xlu0 %v2864, 96
        %v3116 = vpop.permute.xlu0 %3115
        %3117 = vrot.lane.b32.xlu0 %v2869, 96
        %v3118 = vpop.permute.xlu0 %3117
        %3119 = vrot.lane.b32.xlu0 %v2872, 96
        %v3120 = vpop.permute.xlu0 %3119
        %3121 = vrot.lane.b32.xlu0 %v2877, 96
        %v3122 = vpop.permute.xlu0 %3121
        %3123 = vrot.lane.b32.xlu0 %v2880, 96
        %v3124 = vpop.permute.xlu0 %3123
        %3125 = vrot.lane.b32.xlu0 %v2885, 96
        %v3126 = vpop.permute.xlu0 %3125
        %3127 = vrot.lane.b32.xlu0 %v2888, 96
        %v3128 = vpop.permute.xlu0 %3127
        %3129 = vrot.lane.b32.xlu0 %v2893, 96
        %v3130 = vpop.permute.xlu0 %3129
        %3131 = vrot.lane.b32.xlu0 %v2896, 96
        %v3132 = vpop.permute.xlu0 %3131
        %3133 = vrot.lane.b32.xlu0 %v2901, 96
        %v3134 = vpop.permute.xlu0 %3133
        %3135 = vrot.lane.b32.xlu0 %v2904, 96
        %v3136 = vpop.permute.xlu0 %3135
        %3137 = vrot.lane.b32.xlu0 %v2909, 96
        %v3138 = vpop.permute.xlu0 %3137
        %3139 = vrot.lane.b32.xlu0 %v2912, 96
        %v3140 = vpop.permute.xlu0 %3139
        %vm3157 = vcmask 1048320
        %3158 = vst.msk [vmem:[#allocation2] sm:$0xff] %vm3157, %v3110
        %3159 = vst.msk [vmem:[#allocation2 + $0x8] sm:$0xff] %vm3157, %v3112
        %3160 = vst.msk [vmem:[#allocation2 + $0x10] sm:$0xff] %vm3157, %v3114
        %3161 = vst.msk [vmem:[#allocation2 + $0x18] sm:$0xff] %vm3157, %v3116
        %3162 = vst.msk [vmem:[#allocation2 + $0x20] sm:$0xff] %vm3157, %v3118
        %3163 = vst.msk [vmem:[#allocation2 + $0x28] sm:$0xff] %vm3157, %v3120
        %3164 = vst.msk [vmem:[#allocation2 + $0x30] sm:$0xff] %vm3157, %v3122
        %3165 = vst.msk [vmem:[#allocation2 + $0x38] sm:$0xff] %vm3157, %v3124
        %3166 = vst.msk [vmem:[#allocation2 + $0x40] sm:$0xff] %vm3157, %v3126
        %3167 = vst.msk [vmem:[#allocation2 + $0x48] sm:$0xff] %vm3157, %v3128
        %3168 = vst.msk [vmem:[#allocation2 + $0x50] sm:$0xff] %vm3157, %v3130
        %3169 = vst.msk [vmem:[#allocation2 + $0x58] sm:$0xff] %vm3157, %v3132
        %3170 = vst.msk [vmem:[#allocation2 + $0x60] sm:$0xff] %vm3157, %v3134
        %3171 = vst.msk [vmem:[#allocation2 + $0x68] sm:$0xff] %vm3157, %v3136
        %3172 = vst.msk [vmem:[#allocation2 + $0x70] sm:$0xff] %vm3157, %v3138
        %3173 = vst.msk [vmem:[#allocation2 + $0x78] sm:$0xff] %vm3157, %v3140
        %v3174 = vld [vmem:[#allocation2] sm:$0xff]
        %v3175 = vld [vmem:[#allocation2 + $0x8] sm:$0xff]
        %v3176 = vld [vmem:[#allocation2 + $0x10] sm:$0xff]
        %v3177 = vld [vmem:[#allocation2 + $0x18] sm:$0xff]
        %v3178 = vld [vmem:[#allocation2 + $0x20] sm:$0xff]
        %v3179 = vld [vmem:[#allocation2 + $0x28] sm:$0xff]
        %v3180 = vld [vmem:[#allocation2 + $0x30] sm:$0xff]
        %v3181 = vld [vmem:[#allocation2 + $0x38] sm:$0xff]
        %v3182 = vld [vmem:[#allocation2 + $0x40] sm:$0xff]
        %v3183 = vld [vmem:[#allocation2 + $0x48] sm:$0xff]
        %v3184 = vld [vmem:[#allocation2 + $0x50] sm:$0xff]
        %v3185 = vld [vmem:[#allocation2 + $0x58] sm:$0xff]
        %v3186 = vld [vmem:[#allocation2 + $0x60] sm:$0xff]
        %v3187 = vld [vmem:[#allocation2 + $0x68] sm:$0xff]
        %v3188 = vld [vmem:[#allocation2 + $0x70] sm:$0xff]
        %v3189 = vld [vmem:[#allocation2 + $0x78] sm:$0xff]
        %v3190 = vpack.c.bf16 %v3175, %v3174
        %v3191 = vpack.c.bf16 %v3177, %v3176
        %v3192 = vpack.c.bf16 %v3179, %v3178
        %v3193 = vpack.c.bf16 %v3181, %v3180
        %v3194 = vpack.c.bf16 %v3183, %v3182
        %v3195 = vpack.c.bf16 %v3185, %v3184
        %v3196 = vpack.c.bf16 %v3187, %v3186
        %v3197 = vpack.c.bf16 %v3189, %v3188
        %v3206 = vunpack.c.l.b16 %v3190
        %v3207 = vunpack.c.h.b16 %v3190
        %v3208 = vunpack.c.l.b16 %v3191
        %v3209 = vunpack.c.h.b16 %v3191
        %v3210 = vunpack.c.l.b16 %v3192
        %v3211 = vunpack.c.h.b16 %v3192
        %v3212 = vunpack.c.l.b16 %v3193
        %v3213 = vunpack.c.h.b16 %v3193
        %v3214 = vunpack.c.l.b16 %v3194
        %v3215 = vunpack.c.h.b16 %v3194
        %v3216 = vunpack.c.l.b16 %v3195
        %v3217 = vunpack.c.h.b16 %v3195
        %v3218 = vunpack.c.l.b16 %v3196
        %v3219 = vunpack.c.h.b16 %v3196
        %v3220 = vunpack.c.l.b16 %v3197
        %v3221 = vunpack.c.h.b16 %v3197
        %v3222 = vpack.c.b16 %v3206, %v3206
        %v3223 = vpack.c.b16 %v3207, %v3207
        %v3224 = vpack.c.b16 %v3208, %v3208
        %v3225 = vpack.c.b16 %v3209, %v3209
        %v3226 = vpack.c.b16 %v3210, %v3210
        %v3227 = vpack.c.b16 %v3211, %v3211
        %v3228 = vpack.c.b16 %v3212, %v3212
        %v3229 = vpack.c.b16 %v3213, %v3213
        %v3230 = vpack.c.b16 %v3214, %v3214
        %v3231 = vpack.c.b16 %v3215, %v3215
        %v3232 = vpack.c.b16 %v3216, %v3216
        %v3233 = vpack.c.b16 %v3217, %v3217
        %v3234 = vpack.c.b16 %v3218, %v3218
        %v3235 = vpack.c.b16 %v3219, %v3219
        %v3236 = vpack.c.b16 %v3220, %v3220
        %v3237 = vpack.c.b16 %v3221, %v3221
        %3254 = vst [vmem:[%s251] sm:$0xf] %v3222
        %3255 = vst [vmem:[%s251 + $0x4] sm:$0xf] %v3223
        %3256 = vst [vmem:[%s251 + $0x8] sm:$0xf] %v3224
        %3257 = vst [vmem:[%s251 + $0xc] sm:$0xf] %v3225
        %3258 = vst [vmem:[%s251 + $0x10] sm:$0xf] %v3226
        %3259 = vst [vmem:[%s251 + $0x14] sm:$0xf] %v3227
        %3260 = vst [vmem:[%s251 + $0x18] sm:$0xf] %v3228
        %3261 = vst [vmem:[%s251 + $0x1c] sm:$0xf] %v3229
        %3262 = vst [vmem:[%s251 + $0x20] sm:$0xf] %v3230
        %3263 = vst [vmem:[%s251 + $0x24] sm:$0xf] %v3231
        %3264 = vst [vmem:[%s251 + $0x28] sm:$0xf] %v3232
        %3265 = vst [vmem:[%s251 + $0x2c] sm:$0xf] %v3233
        %3266 = vst [vmem:[%s251 + $0x30] sm:$0xf] %v3234
        %3267 = vst [vmem:[%s251 + $0x34] sm:$0xf] %v3235
        %3268 = vst [vmem:[%s251 + $0x38] sm:$0xf] %v3236
        %3269 = vst [vmem:[%s251 + $0x3c] sm:$0xf] %v3237
        %s3270 = sand.u32 %s124, 1
        %s3271 = scalar_lea.sflag [#allocation4], %s3270
        %s3272 = sand.u32 %s124, 1
        %s3273 = smul.addr %s3272, 64
        %s3274 = scalar_lea.vmem [#allocation3], %s3273
        %s3275 = sand.u32 %s152, 1
        %s3276 = scalar_lea.sflag [#allocation6], %s3275
        %s3277 = sand.u32 %s152, 1
        %s3278 = smul.addr %s3277, 256
        %s3279 = scalar_lea.vmem [#allocation5], %s3278
        // Predicated region
        $region33: #{tpu_custom_call.1} parent=31 // pred_check
          %p3280 = pneg %p134
        $region34: #{tpu_custom_call.1} parent=31 // pred_check_branch
          %3282 = sbr.rel (%p3280) target = $region36
        $region35: #{tpu_custom_call.1} parent=31 // pred_region
          %s3283 = smul.u32 16, %s27
          %s3285 = ssub.s32 1024, 1024
          %3286 = vsyncadd %s3271, %s3285
          %s3287 = smul.addr %s26, 16
          %s3288 = sadd.s32 %s3283, %s3287
          %s3289 = smul.addr %s3288, 64
          %s3290 = scalar_lea.hbm %s3, %s3289
          %s3291 = sshll.u32 %s3274, 4
          %s3292 = int_to_ptr.vmem [resolvable:$true] %s3291
          %3297 = dma.vmem_to_hbm [thread:$0]  %s3292, 1024, %s3290, %s3271, 64, 64, 4
        $region36: #{tpu_custom_call.1} parent=31 // pred_fallthru
          _
        // Predicated region
        $region37: #{tpu_custom_call.1} parent=31 // pred_check
          %p3298 = pneg %p162
        $region38: #{tpu_custom_call.1} parent=31 // pred_check_branch
          %3300 = sbr.rel (%p3298) target = $region40
        $region39: #{tpu_custom_call.1} parent=31 // pred_region
          %s3301 = smul.u32 16, %s27
          %s3303 = ssub.s32 4096, 4096
          %3304 = vsyncadd %s3276, %s3303
          %s3305 = smul.addr %s26, 64
          %s3306 = sadd.s32 %s3301, %s3305
          %s3307 = smul.addr %s3306, 64
          %s3308 = scalar_lea.hbm %s4, %s3307
          %s3309 = sshll.u32 %s3279, 4
          %s3310 = int_to_ptr.vmem [resolvable:$true] %s3309
          %3315 = dma.vmem_to_hbm [thread:$0]  %s3310, 4096, %s3308, %s3276, 64, 64, 4
        $region40: #{tpu_custom_call.1} parent=31 // pred_fallthru
          _
      $region32: #{tpu_custom_call.1} parent=5 // pred_fallthru
        _
      %p3316 = scmp.le.s32.totalorder 2, %s17
      // Predicated region
      $region41: #{tpu_custom_call.1} parent=5 // pred_check
        %p3317 = pneg %p3316
      $region42: #{tpu_custom_call.1} parent=5 // pred_check_branch
        %3319 = sbr.rel (%p3317) target = $region44
      $region43: #{tpu_custom_call.1} parent=5 // pred_region
        %s3320 = ssub.s32 %s17, 2
        // Predicated region
        $region45: #{tpu_custom_call.1} parent=43 // pred_check
          %p3321 = pneg %p140
        $region46: #{tpu_custom_call.1} parent=43 // pred_check_branch
          %3323 = sbr.rel (%p3321) target = $region48
        $region47: #{tpu_custom_call.1} parent=43 // pred_region
          %s3324 = sand.u32 %s125, 1
          %s3325 = scalar_lea.sflag [#allocation4], %s3324
          %s3326 = sand.u32 %s125, 1
          %s3327 = smul.addr %s3326, 64
          %s3328 = scalar_lea.vmem [#allocation3], %s3327
          %3329 = dma.done %s3325, 1024
        $region48: #{tpu_custom_call.1} parent=43 // pred_fallthru
          _
        // Predicated region
        $region49: #{tpu_custom_call.1} parent=43 // pred_check
          %p3330 = pneg %p168
        $region50: #{tpu_custom_call.1} parent=43 // pred_check_branch
          %3332 = sbr.rel (%p3330) target = $region52
        $region51: #{tpu_custom_call.1} parent=43 // pred_region
          %s3333 = sand.u32 %s153, 1
          %s3334 = scalar_lea.sflag [#allocation6], %s3333
          %s3335 = sand.u32 %s153, 1
          %s3336 = smul.addr %s3335, 256
          %s3337 = scalar_lea.vmem [#allocation5], %s3336
          %3338 = dma.done %s3334, 4096
        $region52: #{tpu_custom_call.1} parent=43 // pred_fallthru
          _
      $region44: #{tpu_custom_call.1} parent=5 // pred_fallthru
        _
    $region6: #{tpu_custom_call.1} parent=1 // loop_footer
      %s21 = sadd.s32 1, %s17
    $region7: #{tpu_custom_call.1} parent=1 // loop_footer_branch
      %16 = sbr.rel target = $region3
    $region8: #{tpu_custom_call.1} parent=1 // loop_exit
      _
    %3339 = vsyncpa [#allocation4], 1
    %s3340 = scalar_lea.sflag [#allocation4], 1
    %3341 = vsyncpa %s3340, 1
    %3342 = vsyncpa [#allocation6], 1
    %s3343 = scalar_lea.sflag [#allocation6], 1
    %3344 = vsyncpa %s3343, 1

</llo_original>
